<compile_context>
chip_gen: v7x
topology: tpu7x:2x2x1
jax: 0.10.0
libtpu: 0.0.40
codegen_flags: <defaults>
</compile_context>

<pallas_src>
import math
import numpy as np
import jax
import jax.numpy as jnp
from jax import lax
from jax.experimental import pallas as pl
from jax.experimental.pallas import tpu as pltpu

LANE = 128


def _round_up(x, m):
    return ((x + m - 1) // m) * m


def _pick_q_tile(n):
    # >=256 preferred to fill the 2x256^2 MXU on v6e/v7x; fall back gracefully.
    for t in (512, 256, 128):
        if n % t == 0:
            return t
    return n


def _bf16_exp_default():
    # v5e has no bf16 EUP/VPU path; keep softmax math in f32 there.
    try:
        kind = jax.devices()[0].device_kind.lower()
    except Exception:
        return True
    return not ("v5 lite" in kind or "v5e" in kind or "v5litepod" in kind)


def make_mhsa_kernel(heads, dp, dvp, n_keys, tq, use_bf16_exp):
    kq = heads * dp      # width of the Q section (== width of the K section)
    vo = 2 * kq          # start of the V section

    def mhsa_kernel(x_ref, w_ref, emb_ref, o_ref, qkv_ref):
        # x_ref:   (1, N, Cp)            bf16   one batch element (channel padded)
        # w_ref:   (Cp, heads*(2dp+dvp)) bf16   [Wq*scale | Wk | Wv], 128-aligned per head
        # emb_ref: (N, heads*dp)         bf16   AbsPosEmb, tiled head-major, d-padded
        # o_ref:   (1, Tq, heads*dvp)    bf16   lane-dense output slab for this q tile
        # qkv_ref: (N, heads*(2dp+dvp))  bf16   persistent scratch: [Q | K+emb | V]
        t = pl.program_id(1)

        # ---- once per batch element: fused projection for all heads ----------
        @pl.when(t == 0)
        def _():
            x = x_ref[0]                                          # [N, Cp] bf16
            qkv = jnp.dot(x, w_ref[...],
                          preferred_element_type=jnp.float32)     # [N, Ktot] f32
            q_cols = qkv[:, :kq]
            # fold positional logits into K:  q@k.T + q@emb.T == q@(k+emb).T
            k_cols = qkv[:, kq:vo] + emb_ref[...]                 # f32 add
            v_cols = qkv[:, vo:]
            qkv_ref[:, :kq] = q_cols.astype(jnp.bfloat16)
            qkv_ref[:, kq:vo] = k_cols.astype(jnp.bfloat16)
            qkv_ref[:, vo:] = v_cols.astype(jnp.bfloat16)

        # ---- attention for this query-row tile -------------------------------
        row0 = pl.multiple_of(t * tq, tq)
        for h in range(heads):                                    # static, small
            q_h = qkv_ref[pl.ds(row0, tq), h * dp:(h + 1) * dp]          # [Tq, dp]
            k_h = qkv_ref[:, kq + h * dp:kq + (h + 1) * dp]              # [N,  dp]
            v_h = qkv_ref[:, vo + h * dvp:vo + (h + 1) * dvp]            # [N, dvp]

            # contract last axes of both (K stays [N, dp]; no in-kernel transpose)
            logits = lax.dot_general(
                q_h, k_h,
                dimension_numbers=(((1,), (1,)), ((), ())),
                preferred_element_type=jnp.float32)                      # [Tq, N]

            m = jnp.max(logits, axis=-1, keepdims=True)
            if use_bf16_exp:
                # bf16 EUP exp (v6e/v7x); row sum accumulated in f32.
                p = jnp.exp((logits - m).astype(jnp.bfloat16))           # [Tq, N] bf16
                l = jnp.sum(p, axis=-1, keepdims=True, dtype=jnp.float32)
            else:
                # v5e: f32 softmax math (no bf16 EUP path).
                p32 = jnp.exp(logits - m)
                l = jnp.sum(p32, axis=-1, keepdims=True)
                p = p32.astype(jnp.bfloat16)
            inv_l = pl.reciprocal(l, approx=True)                        # EUP

            out_h = jnp.dot(p, v_h, preferred_element_type=jnp.float32) * inv_l
            # direct lane-aligned store (no concat, bounded live ranges)
            o_ref[0, :, h * dvp:(h + 1) * dvp] = out_h.astype(o_ref.dtype)

    return mhsa_kernel


def mhsa_forward(featuremap, wqk_conv, wv_conv, pos_height, pos_width,
                 heads, dim_qk, dim_v):
    """featuremap: [B, C, H, W] (NCHW, like the PyTorch module).
    wqk_conv: [2*heads*dim_qk, C]  (1x1 conv weight, squeezed)
    wv_conv:  [heads*dim_v, C]
    pos_height: [H, dim_qk], pos_width: [W, dim_qk]
    Returns [B, heads*dim_v, H, W] (f32), matching the PyTorch forward.
    """
    B, C, H, W = featuremap.shape
    N = H * W
    scale = dim_qk ** (-0.5)

    dp = _round_up(dim_qk, LANE)      # per-head q/k width, 128-lane aligned
    dvp = _round_up(dim_v, LANE)      # per-head v width, 128-lane aligned
    cp = _round_up(C, LANE)           # channel axis lane-dense
    tq = _pick_q_tile(N)
    k_tot = heads * (2 * dp + dvp)
    use_bf16_exp = _bf16_exp_default()

    # glue: NCHW -> [B, N, Cp] bf16
    x = jnp.transpose(featuremap, (0, 2, 3, 1)).reshape(B, N, C)
    x = jnp.pad(x, ((0, 0), (0, 0), (0, cp - C))).astype(jnp.bfloat16)

    def head_cols(w_out_in, d, d_pad):
        # [heads*d, C] 1x1-conv weight -> [Cp, heads*d_pad] columns,
        # head-major / d-minor, zero-padded so every per-head slice is 128-aligned.
        w = w_out_in.reshape(heads, d, C)
        w = jnp.pad(w, ((0, 0), (0, d_pad - d), (0, cp - C)))
        return jnp.transpose(w, (2, 0, 1)).reshape(cp, heads * d_pad)

    wq_cols = head_cols(wqk_conv[: heads * dim_qk], dim_qk, dp) * scale   # scale folded
    wk_cols = head_cols(wqk_conv[heads * dim_qk:], dim_qk, dp)
    wv_cols = head_cols(wv_conv, dim_v, dvp)
    w_fused = jnp.concatenate([wq_cols, wk_cols, wv_cols], axis=1).astype(jnp.bfloat16)

    # AbsPosEmb: emb[h, w] = height[h] + width[w] -> [N, dim_qk]; pad + tile head-major.
    emb = (pos_height[:, None, :] + pos_width[None, :, :]).reshape(N, dim_qk)
    emb = jnp.pad(emb, ((0, 0), (0, dp - dim_qk)))
    emb = jnp.tile(emb, (1, heads)).astype(jnp.bfloat16)                  # [N, heads*dp]

    kernel = make_mhsa_kernel(heads, dp, dvp, N, tq, use_bf16_exp)

    flops = (2 * B * N * cp * k_tot
             + 2 * B * heads * N * N * dp
             + 2 * B * heads * N * N * dvp)
    bytes_accessed = (x.size * 2 + w_fused.size * 2 + emb.size * 2
                      + B * N * heads * dvp * 2)
    cost = pl.CostEstimate(flops=flops,
                           transcendentals=B * heads * N * N,
                           bytes_accessed=bytes_accessed)

    # VMEM budget: double-buffered blocks + persistent qkv scratch + f32 temps.
    vmem_est = (2 * N * cp * 2 + 2 * cp * k_tot * 2 + 2 * N * heads * dp * 2
                + 2 * tq * heads * dvp * 2 + N * k_tot * 2
                + 4 * tq * N * 4 + (1 << 20))
    vmem_limit = min(64 << 20, max(32 << 20, int(1.25 * vmem_est)))

    attn = pl.pallas_call(
        kernel,
        out_shape=jax.ShapeDtypeStruct((B, N, heads * dvp), jnp.bfloat16),
        grid_spec=pltpu.PrefetchScalarGridSpec(
            num_scalar_prefetch=0,
            grid=(B, N // tq),
            in_specs=[
                pl.BlockSpec((1, N, cp), lambda b, t: (b, 0, 0)),
                pl.BlockSpec((cp, k_tot), lambda b, t: (0, 0)),
                pl.BlockSpec((N, heads * dp), lambda b, t: (0, 0)),
            ],
            out_specs=pl.BlockSpec((1, tq, heads * dvp), lambda b, t: (b, t, 0)),
            scratch_shapes=[pltpu.VMEM((N, k_tot), jnp.bfloat16)],
        ),
        compiler_params=pltpu.CompilerParams(
            # q-tile axis must stay "arbitrary": the per-batch qkv scratch is
            # (re)built under t == 0, so tiles of one batch element must run
            # in order on one core. B is the megacore-parallel axis.
            dimension_semantics=("parallel", "arbitrary"),
            vmem_limit_bytes=vmem_limit),
        cost_estimate=cost,
    )(x, w_fused, emb)

    # glue: [B, N, heads*dvp] -> 'B (H W) (h d) -> B (h d) H W'; drop value padding.
    out = attn.reshape(B, H, W, heads, dvp)[..., :dim_v]
    out = jnp.transpose(out, (0, 3, 4, 1, 2)).reshape(B, heads * dim_v, H, W)
    return out.astype(jnp.float32)


def mhsa_reference(featuremap, wqk_conv, wv_conv, pos_height, pos_width,
                   heads, dim_qk, dim_v):
    """Pure-JAX fp32 reference mirroring the PyTorch forward."""
    B, C, H, W = featuremap.shape
    N = H * W
    scale = dim_qk ** (-0.5)
    x = jnp.transpose(featuremap, (0, 2, 3, 1)).reshape(B, N, C)
    wq = wqk_conv[: heads * dim_qk].reshape(heads, dim_qk, C)
    wk = wqk_conv[heads * dim_qk:].reshape(heads, dim_qk, C)
    wv = wv_conv.reshape(heads, dim_v, C)
    q = jnp.einsum('bnc,hdc->bhnd', x, wq) * scale
    k = jnp.einsum('bnc,hdc->bhnd', x, wk)
    v = jnp.einsum('bnc,hdc->bhnd', x, wv)
    emb = (pos_height[:, None, :] + pos_width[None, :, :]).reshape(N, dim_qk)
    logits = jnp.einsum('bhxd,bhyd->bhxy', q, k) + jnp.einsum('bhxd,yd->bhxy', q, emb)
    weights = jax.nn.softmax(logits, axis=-1)
    attn = jnp.einsum('bhxy,bhyd->bhxd', weights, v)
    out = attn.reshape(B, heads, H, W, dim_v).transpose(0, 1, 4, 2, 3)
    return out.reshape(B, heads * dim_v, H, W)


if __name__ == "__main__":
    # small shapes consistent with the module (AbsPosEmb path)
    B, C, H, W = 2, 4, 8, 8
    heads, dim_qk, dim_v = 2, 32, 32

    key = jax.random.PRNGKey(0)
    k1, k2, k3, k4, k5 = jax.random.split(key, 5)

    # deterministic synthetic parameters (1x1-conv weights squeezed to [out, in])
    wqk_conv = jax.random.normal(k1, (2 * heads * dim_qk, C), jnp.float32) * (1.0 / math.sqrt(C))
    wv_conv = jax.random.normal(k2, (heads * dim_v, C), jnp.float32) * (1.0 / math.sqrt(C))
    pos_scale = dim_qk ** (-0.5)
    pos_height = jax.random.normal(k3, (H, dim_qk), jnp.float32) * pos_scale
    pos_width = jax.random.normal(k4, (W, dim_qk), jnp.float32) * pos_scale
    featuremap = jax.random.normal(k5, (B, C, H, W), jnp.float32)

    out = mhsa_forward(featuremap, wqk_conv, wv_conv, pos_height, pos_width,
                       heads, dim_qk, dim_v)
    out = jax.block_until_ready(out)

    ref = mhsa_reference(featuremap, wqk_conv, wv_conv, pos_height, pos_width,
                         heads, dim_qk, dim_v)
    # bf16 MXU operands / bf16 exp / bf16 output with f32 accumulation -> bf16-level tolerance.
    np.testing.assert_allclose(np.asarray(out), np.asarray(ref), rtol=2e-2, atol=2e-2)

    print("KERNEL_OK")
</pallas_src>

<mosaic_0001>
module attributes {stable_mosaic.version = 11 : i64} {
  func.func @mhsa_kernel(%arg0: i32, %arg1: i32, %arg2: memref<1x64x128xbf16, #tpu.memory_space<vmem>>, %arg3: memref<128x768xbf16, #tpu.memory_space<vmem>>, %arg4: memref<64x256xbf16, #tpu.memory_space<vmem>>, %arg5: memref<1x64x256xbf16, #tpu.memory_space<vmem>>, %arg6: memref<64x768xbf16, #tpu.memory_space<vmem>>) attributes {dimension_semantics = [#tpu.dimension_semantics<parallel>, #tpu.dimension_semantics<arbitrary>], iteration_bounds = array<i64: 2, 1>, scalar_prefetch = 0 : i64, scratch_operands = 1 : i64, tpu.core_type = #tpu.core_type<tc>, window_params = [{transform_indices = @transform_0, window_bounds = array<i64: 1, 64, 128>}, {pipeline_mode = #tpu.pipeline_mode<synchronous>, transform_indices = @transform_1, window_bounds = array<i64: 128, 768>}, {pipeline_mode = #tpu.pipeline_mode<synchronous>, transform_indices = @transform_2, window_bounds = array<i64: 64, 256>}, {transform_indices = @transform_3, window_bounds = array<i64: 1, 64, 256>}]} {
    %c0_i32 = arith.constant 0 : i32
    %0 = arith.cmpi eq, %arg1, %c0_i32 : i32
    %1 = arith.extui %0 : i1 to i32
    %c0_i32_0 = arith.constant 0 : i32
    %2 = arith.cmpi ne, %1, %c0_i32_0 : i32
    scf.if %2 {
      %c0_18 = arith.constant 0 : index
      %c0_19 = arith.constant 0 : index
      %c0_20 = arith.constant 0 : index
      %49 = vector.load %arg2[%c0_18, %c0_19, %c0_20] : memref<1x64x128xbf16, #tpu.memory_space<vmem>>, vector<1x64x128xbf16>
      %50 = vector.shape_cast %49 : vector<1x64x128xbf16> to vector<64x128xbf16>
      %c0_21 = arith.constant 0 : index
      %c0_22 = arith.constant 0 : index
      %51 = vector.load %arg3[%c0_21, %c0_22] : memref<128x768xbf16, #tpu.memory_space<vmem>>, vector<128x768xbf16>
      %cst_23 = arith.constant dense<0.000000e+00> : vector<64x768xf32>
      %52 = tpu.matmul %50, %51, %cst_23 {dimension_numbers = #tpu.dot_dimension_numbers<[1], [0], [0], [1], [0, 0, 1, 1], [], []>} : vector<64x128xbf16>, vector<128x768xbf16>, vector<64x768xf32> -> vector<64x768xf32>
      %53 = vector.extract_strided_slice %52 {offsets = [0, 0], sizes = [64, 256], strides = [1, 1]} : vector<64x768xf32> to vector<64x256xf32>
      %54 = vector.extract_strided_slice %52 {offsets = [0, 256], sizes = [64, 256], strides = [1, 1]} : vector<64x768xf32> to vector<64x256xf32>
      %c0_24 = arith.constant 0 : index
      %c0_25 = arith.constant 0 : index
      %55 = vector.load %arg4[%c0_24, %c0_25] : memref<64x256xbf16, #tpu.memory_space<vmem>>, vector<64x256xbf16>
      %56 = arith.extf %55 : vector<64x256xbf16> to vector<64x256xf32>
      %57 = arith.addf %54, %56 : vector<64x256xf32>
      %58 = vector.extract_strided_slice %52 {offsets = [0, 512], sizes = [64, 256], strides = [1, 1]} : vector<64x768xf32> to vector<64x256xf32>
      %59 = arith.truncf %53 : vector<64x256xf32> to vector<64x256xbf16>
      %c0_26 = arith.constant 0 : index
      %c0_27 = arith.constant 0 : index
      %60 = vector.load %arg6[%c0_26, %c0_27] : memref<64x768xbf16, #tpu.memory_space<vmem>>, vector<64x256xbf16>
      tpu.vector_store %arg6[%c0_26, %c0_27], %59 {strides = array<i32>} : memref<64x768xbf16, #tpu.memory_space<vmem>>, vector<64x256xbf16>,
      %61 = arith.truncf %57 : vector<64x256xf32> to vector<64x256xbf16>
      %c0_28 = arith.constant 0 : index
      %c256_29 = arith.constant 256 : index
      %62 = vector.load %arg6[%c0_28, %c256_29] : memref<64x768xbf16, #tpu.memory_space<vmem>>, vector<64x256xbf16>
      tpu.vector_store %arg6[%c0_28, %c256_29], %61 {strides = array<i32>} : memref<64x768xbf16, #tpu.memory_space<vmem>>, vector<64x256xbf16>,
      %63 = arith.truncf %58 : vector<64x256xf32> to vector<64x256xbf16>
      %c0_30 = arith.constant 0 : index
      %c512_31 = arith.constant 512 : index
      %64 = vector.load %arg6[%c0_30, %c512_31] : memref<64x768xbf16, #tpu.memory_space<vmem>>, vector<64x256xbf16>
      tpu.vector_store %arg6[%c0_30, %c512_31], %63 {strides = array<i32>} : memref<64x768xbf16, #tpu.memory_space<vmem>>, vector<64x256xbf16>,
    } else {
    }
    %c64_i32 = arith.constant 64 : i32
    %3 = arith.muli %arg1, %c64_i32 : i32
    %4 = tpu.assume_multiple %3, 64 : i32
    %5 = arith.index_cast %4 : i32 to index
    %c0 = arith.constant 0 : index
    %6 = vector.load %arg6[%5, %c0] : memref<64x768xbf16, #tpu.memory_space<vmem>>, vector<64x128xbf16>
    %c0_1 = arith.constant 0 : index
    %c256 = arith.constant 256 : index
    %7 = vector.load %arg6[%c0_1, %c256] : memref<64x768xbf16, #tpu.memory_space<vmem>>, vector<64x128xbf16>
    %c0_2 = arith.constant 0 : index
    %c512 = arith.constant 512 : index
    %8 = vector.load %arg6[%c0_2, %c512] : memref<64x768xbf16, #tpu.memory_space<vmem>>, vector<64x128xbf16>
    %cst = arith.constant dense<0.000000e+00> : vector<64x64xf32>
    %9 = tpu.matmul %6, %7, %cst {dimension_numbers = #tpu.dot_dimension_numbers<[1], [1], [0], [0], [0, 0, 1, 0], [], []>} : vector<64x128xbf16>, vector<64x128xbf16>, vector<64x64xf32> -> vector<64x64xf32>
    %cst_3 = arith.constant dense<0xFF800000> : vector<64xf32>
    %10 = vector.multi_reduction <maximumf>, %9, %cst_3 [1] : vector<64x64xf32> to vector<64xf32>
    %11 = vector.shape_cast %10 : vector<64xf32> to vector<64x1xf32>
    %12 = vector.broadcast %11 : vector<64x1xf32> to vector<64x64xf32>
    %13 = arith.subf %9, %12 : vector<64x64xf32>
    %14 = arith.truncf %13 : vector<64x64xf32> to vector<64x64xbf16>
    %15 = math.exp %14 : vector<64x64xbf16>
    %16 = arith.extf %15 : vector<64x64xbf16> to vector<64x64xf32>
    %cst_4 = arith.constant dense<0.000000e+00> : vector<64xf32>
    %17 = vector.multi_reduction <add>, %16, %cst_4 [1] : vector<64x64xf32> to vector<64xf32>
    %18 = vector.shape_cast %17 : vector<64xf32> to vector<64x1xf32>
    %19 = tpu.reciprocal %18 {approx = true} : vector<64x1xf32> -> vector<64x1xf32>
    %cst_5 = arith.constant dense<0.000000e+00> : vector<64x128xf32>
    %20 = tpu.matmul %15, %8, %cst_5 {dimension_numbers = #tpu.dot_dimension_numbers<[1], [0], [0], [1], [0, 0, 1, 1], [], []>} : vector<64x64xbf16>, vector<64x128xbf16>, vector<64x128xf32> -> vector<64x128xf32>
    %21 = vector.broadcast %19 : vector<64x1xf32> to vector<64x128xf32>
    %22 = arith.mulf %20, %21 : vector<64x128xf32>
    %23 = arith.truncf %22 : vector<64x128xf32> to vector<64x128xbf16>
    %c0_6 = arith.constant 0 : index
    %c0_7 = arith.constant 0 : index
    %c0_8 = arith.constant 0 : index
    %24 = vector.load %arg5[%c0_6, %c0_7, %c0_8] : memref<1x64x256xbf16, #tpu.memory_space<vmem>>, vector<1x64x128xbf16>
    %25 = vector.shape_cast %24 : vector<1x64x128xbf16> to vector<64x128xbf16>
    %26 = vector.shape_cast %23 : vector<64x128xbf16> to vector<1x64x128xbf16>
    tpu.vector_store %arg5[%c0_6, %c0_7, %c0_8], %26 {strides = array<i32>} : memref<1x64x256xbf16, #tpu.memory_space<vmem>>, vector<1x64x128xbf16>,
    %27 = arith.index_cast %4 : i32 to index
    %c128 = arith.constant 128 : index
    %28 = vector.load %arg6[%27, %c128] : memref<64x768xbf16, #tpu.memory_space<vmem>>, vector<64x128xbf16>
    %c0_9 = arith.constant 0 : index
    %c384 = arith.constant 384 : index
    %29 = vector.load %arg6[%c0_9, %c384] : memref<64x768xbf16, #tpu.memory_space<vmem>>, vector<64x128xbf16>
    %c0_10 = arith.constant 0 : index
    %c640 = arith.constant 640 : index
    %30 = vector.load %arg6[%c0_10, %c640] : memref<64x768xbf16, #tpu.memory_space<vmem>>, vector<64x128xbf16>
    %cst_11 = arith.constant dense<0.000000e+00> : vector<64x64xf32>
    %31 = tpu.matmul %28, %29, %cst_11 {dimension_numbers = #tpu.dot_dimension_numbers<[1], [1], [0], [0], [0, 0, 1, 0], [], []>} : vector<64x128xbf16>, vector<64x128xbf16>, vector<64x64xf32> -> vector<64x64xf32>
    %cst_12 = arith.constant dense<0xFF800000> : vector<64xf32>
    %32 = vector.multi_reduction <maximumf>, %31, %cst_12 [1] : vector<64x64xf32> to vector<64xf32>
    %33 = vector.shape_cast %32 : vector<64xf32> to vector<64x1xf32>
    %34 = vector.broadcast %33 : vector<64x1xf32> to vector<64x64xf32>
    %35 = arith.subf %31, %34 : vector<64x64xf32>
    %36 = arith.truncf %35 : vector<64x64xf32> to vector<64x64xbf16>
    %37 = math.exp %36 : vector<64x64xbf16>
    %38 = arith.extf %37 : vector<64x64xbf16> to vector<64x64xf32>
    %cst_13 = arith.constant dense<0.000000e+00> : vector<64xf32>
    %39 = vector.multi_reduction <add>, %38, %cst_13 [1] : vector<64x64xf32> to vector<64xf32>
    %40 = vector.shape_cast %39 : vector<64xf32> to vector<64x1xf32>
    %41 = tpu.reciprocal %40 {approx = true} : vector<64x1xf32> -> vector<64x1xf32>
    %cst_14 = arith.constant dense<0.000000e+00> : vector<64x128xf32>
    %42 = tpu.matmul %37, %30, %cst_14 {dimension_numbers = #tpu.dot_dimension_numbers<[1], [0], [0], [1], [0, 0, 1, 1], [], []>} : vector<64x64xbf16>, vector<64x128xbf16>, vector<64x128xf32> -> vector<64x128xf32>
    %43 = vector.broadcast %41 : vector<64x1xf32> to vector<64x128xf32>
    %44 = arith.mulf %42, %43 : vector<64x128xf32>
    %45 = arith.truncf %44 : vector<64x128xf32> to vector<64x128xbf16>
    %c0_15 = arith.constant 0 : index
    %c0_16 = arith.constant 0 : index
    %c128_17 = arith.constant 128 : index
    %46 = vector.load %arg5[%c0_15, %c0_16, %c128_17] : memref<1x64x256xbf16, #tpu.memory_space<vmem>>, vector<1x64x128xbf16>
    %47 = vector.shape_cast %46 : vector<1x64x128xbf16> to vector<64x128xbf16>
    %48 = vector.shape_cast %45 : vector<64x128xbf16> to vector<1x64x128xbf16>
    tpu.vector_store %arg5[%c0_15, %c0_16, %c128_17], %48 {strides = array<i32>} : memref<1x64x256xbf16, #tpu.memory_space<vmem>>, vector<1x64x128xbf16>,
    return
  }
  func.func @transform_0(%arg0: i32, %arg1: i32) -> (i32, i32, i32) {
    %c0_i32 = arith.constant 0 : i32
    %c0_i32_0 = arith.constant 0 : i32
    %c0_i32_1 = arith.constant 0 : i32
    return %arg0, %c0_i32, %c0_i32_0 : i32, i32, i32
  }
  func.func @transform_1(%arg0: i32, %arg1: i32) -> (i32, i32) {
    %c0_i32 = arith.constant 0 : i32
    %c0_i32_0 = arith.constant 0 : i32
    %c0_i32_1 = arith.constant 0 : i32
    return %c0_i32, %c0_i32_0 : i32, i32
  }
  func.func @transform_2(%arg0: i32, %arg1: i32) -> (i32, i32) {
    %c0_i32 = arith.constant 0 : i32
    %c0_i32_0 = arith.constant 0 : i32
    %c0_i32_1 = arith.constant 0 : i32
    return %c0_i32, %c0_i32_0 : i32, i32
  }
  func.func @transform_3(%arg0: i32, %arg1: i32) -> (i32, i32, i32) {
    %c0_i32 = arith.constant 0 : i32
    %c0_i32_0 = arith.constant 0 : i32
    return %arg0, %arg1, %c0_i32 : i32, i32, i32
  }
}

</mosaic_0001>

<llo_original>
// kernel: tpu_custom_call.1
$region0: #{tpu_custom_call.1}
  #allocation0 [shape = 'u32[]', space=smem, size = 0x4, offset = 0x4, fixed_abs, tag = 'smem constant byte address 0x4 - core index']
  #allocation1 [shape = 'u32[144,128]{1,0:T(1,128)}', space=vmem, size = 0x12000, scoped, tag = 'internal scratch']
  #allocation2 [shape = 'bf16[64,768]{1,0:T(16,128)(2,1)}', space=vmem, size = 0x18000, scoped, tag = 'scratch operand']
  %s0 = inlined_call_operand.hbm [shape: bf16[2,64,128], index: 0, kind: input, shape index: {}]
  %s1 = inlined_call_operand.hbm [shape: bf16[128,768], index: 1, kind: input, shape index: {}]
  %s2 = inlined_call_operand.hbm [shape: bf16[64,256], index: 2, kind: input, shape index: {}]
  %s3 = inlined_call_operand.hbm [shape: bf16[2,64,256], index: 3, kind: output, shape index: {}]
  %s4 = sld [smem:[#allocation0]]
  $region61: #{tpu_custom_call.1} parent=0
    _
  %s6 = ssub.s32 1, %s4
  %s7 = scalar_select 0, %s6, %s4
  $region1: #{tpu_custom_call.1} parent=0
    #allocation3 [shape = 'u8[32768]{0}', space=vmem, size = 0x8000, scoped, tag = 'input window, operand 0']
    #allocation4 [shape = 's32[2]{0}', space=sflag, size = 0x8, scoped, tag = 'scoped memory for tpu_custom_call.1']
    #allocation5 [shape = 's32[2]{0}', space=sflag, size = 0x8, scoped, tag = 'scoped memory for tpu_custom_call.1']
    #allocation6 [shape = 'u8[196608]{0}', space=vmem, size = 0x30000, scoped, tag = 'input window, operand 1, single buffered']
    #allocation7 [shape = 's32[1]{0}', space=sflag, size = 0x4, scoped, tag = 'scoped memory for tpu_custom_call.1']
    #allocation8 [shape = 'u8[32768]{0}', space=vmem, size = 0x8000, scoped, tag = 'input window, operand 2, single buffered']
    #allocation9 [shape = 'u8[65536]{0}', space=vmem, size = 0x10000, scoped, tag = 'output window, operand 0']
    %8 = vsyncpa [#allocation4], 0
    %s9 = scalar_lea.sflag [#allocation4], 1
    %10 = vsyncpa %s9, 0
    %11 = vsyncpa [#allocation7], 0
    %12 = vsyncpa [#allocation5], 0
    %s13 = scalar_lea.sflag [#allocation5], 1
    %14 = vsyncpa %s13, 0
    loop: start=0, step=1, limit=4
    $region2: #{tpu_custom_call.1} parent=1 // loop_pre_header
      _
    $region3: #{tpu_custom_call.1} parent=1 // loop_header
      %s16 = sphi 0, %s20
      %p17 = scmp.ge.s32.totalorder %s16, 4
      %s23 = sphi 0, %s35
      %s24 = sphi 0, %s31
      %s25 = sphi 0, %s23
      %s26 = sphi 0, %s24
      %s27 = sphi 0, %s25
      %s28 = sphi 0, %s26
      %s38 = sphi 0, %s40
      %s41 = sphi 0, %s38
      %s42 = sphi 0, %s41
      %s58 = sphi 0, %s42
      %s62 = sphi 0, %s62
      %s64 = sphi 0, %s62
      %s65 = sphi 0, %s64
      %s79 = sphi 0, %s65
      %s83 = sphi 0, %s83
      %s85 = sphi 0, %s83
      %s86 = sphi 0, %s85
      %s100 = sphi 0, %s86
      %s108 = sphi 0, %s110
      %s111 = sphi 0, %s108
      %s112 = sphi 0, %s111
      %s128 = sphi 0, %s112
    $region4: #{tpu_custom_call.1} parent=1 // loop_header_branch
      %19 = sbr.rel (%p17) target = $region8
    $region5: #{tpu_custom_call.1} parent=1 // loop_body
      %s21 = ssub.s32 %s16, 1
      %s22 = ssub.s32 %s16, 2
      %s29 = sadd.s32 1, %s24
      %p30 = scmp.ge.s32.totalorder %s29, 1
      %s31 = scalar_select %p30, 0, %s29
      %s32 = sadd.s32 1, %s23
      %s33 = scalar_select %p30, %s32, %s23
      %p34 = scmp.ge.s32.totalorder %s33, 2
      %s35 = scalar_select %p34, 0, %s33
      %s36 = ssub.s32 %s23, %s35
      %p37 = scmp.eq.s32.totalorder %s36, 0
      %s39 = sadd.s32 %s38, 1
      %s40 = scalar_select %p37, %s38, %s39
      %p43 = pneg %p37
      %p44 = scmp.eq.s32.totalorder %s16, 1
      %p45 = por %p43, %p44
      %p46 = scmp.ne.s32.totalorder %s38, %s41
      %p47 = scmp.eq.s32.totalorder %s16, 0
      %p48 = por %p46, %p47
      %p49 = scmp.ne.s32.totalorder %s38, %s41
      %p50 = scmp.eq.s32.totalorder %s21, 1
      %p51 = por %p49, %p50
      %p52 = scmp.ne.s32.totalorder %s41, %s42
      %p53 = scmp.eq.s32.totalorder %s21, 0
      %p54 = por %p52, %p53
      %p55 = scmp.ne.s32.totalorder %s41, %s42
      %p56 = scmp.eq.s32.totalorder %s22, 1
      %p57 = por %p55, %p56
      %p59 = scmp.ne.s32.totalorder %s42, %s58
      %p60 = scmp.eq.s32.totalorder %s22, 0
      %p61 = por %p59, %p60
      %s63 = sadd.s32 %s62, 1
      %p66 = scmp.eq.s32.totalorder %s16, 1
      %p67 = scmp.ne.s32.totalorder %s62, %s64
      %p68 = scmp.eq.s32.totalorder %s16, 0
      %p69 = por %p67, %p68
      %p70 = scmp.ne.s32.totalorder %s62, %s64
      %p71 = scmp.eq.s32.totalorder %s21, 1
      %p72 = por %p70, %p71
      %p73 = scmp.ne.s32.totalorder %s64, %s65
      %p74 = scmp.eq.s32.totalorder %s21, 0
      %p75 = por %p73, %p74
      %p76 = scmp.ne.s32.totalorder %s64, %s65
      %p77 = scmp.eq.s32.totalorder %s22, 1
      %p78 = por %p76, %p77
      %p80 = scmp.ne.s32.totalorder %s65, %s79
      %p81 = scmp.eq.s32.totalorder %s22, 0
      %p82 = por %p80, %p81
      %s84 = sadd.s32 %s83, 1
      %p87 = scmp.eq.s32.totalorder %s16, 1
      %p88 = scmp.ne.s32.totalorder %s83, %s85
      %p89 = scmp.eq.s32.totalorder %s16, 0
      %p90 = por %p88, %p89
      %p91 = scmp.ne.s32.totalorder %s83, %s85
      %p92 = scmp.eq.s32.totalorder %s21, 1
      %p93 = por %p91, %p92
      %p94 = scmp.ne.s32.totalorder %s85, %s86
      %p95 = scmp.eq.s32.totalorder %s21, 0
      %p96 = por %p94, %p95
      %p97 = scmp.ne.s32.totalorder %s85, %s86
      %p98 = scmp.eq.s32.totalorder %s22, 1
      %p99 = por %p97, %p98
      %p101 = scmp.ne.s32.totalorder %s86, %s100
      %p102 = scmp.eq.s32.totalorder %s22, 0
      %p103 = por %p101, %p102
      %s104 = ssub.s32 %s23, %s35
      %s105 = ssub.s32 %s24, %s31
      %s106 = sor.u32 %s104, %s105
      %p107 = scmp.eq.s32.totalorder %s106, 0
      %s109 = sadd.s32 %s108, 1
      %s110 = scalar_select %p107, %s108, %s109
      %p113 = pneg %p107
      %p114 = scmp.eq.s32.totalorder %s16, 1
      %p115 = por %p113, %p114
      %p116 = scmp.ne.s32.totalorder %s108, %s111
      %p117 = scmp.eq.s32.totalorder %s16, 0
      %p118 = por %p116, %p117
      %p119 = scmp.ne.s32.totalorder %s108, %s111
      %p120 = scmp.eq.s32.totalorder %s21, 1
      %p121 = por %p119, %p120
      %p122 = scmp.ne.s32.totalorder %s111, %s112
      %p123 = scmp.eq.s32.totalorder %s21, 0
      %p124 = por %p122, %p123
      %p125 = scmp.ne.s32.totalorder %s111, %s112
      %p126 = scmp.eq.s32.totalorder %s22, 1
      %p127 = por %p125, %p126
      %p129 = scmp.ne.s32.totalorder %s112, %s128
      %p130 = scmp.eq.s32.totalorder %s22, 0
      %p131 = por %p129, %p130
      %p132 = scmp.le.s32.totalorder 1, %s16
      %p133 = scmp.lt.s32.totalorder %s16, 3
      %p134 = pnand %p132, %p133
      %p135 = pneg %p134
      // Predicated region
      $region9: #{tpu_custom_call.1} parent=5 // pred_check
        _
      $region10: #{tpu_custom_call.1} parent=5 // pred_check_branch
        %137 = sbr.rel (%p134) target = $region12
      $region11: #{tpu_custom_call.1} parent=5 // pred_region
        %s138 = ssub.s32 %s16, 1
        // Predicated region
        $region13: #{tpu_custom_call.1} parent=11 // pred_check
          %p139 = pneg %p75
        $region14: #{tpu_custom_call.1} parent=11 // pred_check_branch
          %141 = sbr.rel (%p139) target = $region16
        $region15: #{tpu_custom_call.1} parent=11 // pred_region
          %s143 = ssub.s32 6144, 6144
          %144 = vsyncadd [#allocation7], %s143
          %s145 = sshll.u32 [#allocation6], 4
          %s146 = int_to_ptr.vmem [resolvable:$true] %s145
          %151 = dma.hbm_to_vmem [thread:$0]  %s1, 6144, %s146, [#allocation7], 384, 384, 24
        $region16: #{tpu_custom_call.1} parent=11 // pred_fallthru
          _
        // Predicated region
        $region17: #{tpu_custom_call.1} parent=11 // pred_check
          %p152 = pneg %p96
        $region18: #{tpu_custom_call.1} parent=11 // pred_check_branch
          %154 = sbr.rel (%p152) target = $region20
        $region19: #{tpu_custom_call.1} parent=11 // pred_region
          %s156 = ssub.s32 1024, 1024
          %157 = vsyncadd [#allocation7], %s156
          %s158 = sshll.u32 [#allocation8], 4
          %s159 = int_to_ptr.vmem [resolvable:$true] %s158
          %164 = dma.hbm_to_vmem [thread:$0]  %s2, 1024, %s159, [#allocation7], 128, 128, 8
        $region20: #{tpu_custom_call.1} parent=11 // pred_fallthru
          _
      $region12: #{tpu_custom_call.1} parent=5 // pred_fallthru
        _
      %p165 = scmp.lt.s32.totalorder %s16, 2
      // Predicated region
      $region21: #{tpu_custom_call.1} parent=5 // pred_check
        %p166 = pneg %p165
      $region22: #{tpu_custom_call.1} parent=5 // pred_check_branch
        %168 = sbr.rel (%p166) target = $region24
      $region23: #{tpu_custom_call.1} parent=5 // pred_region
        // Predicated region
        $region25: #{tpu_custom_call.1} parent=23 // pred_check
          %p169 = pneg %p48
        $region26: #{tpu_custom_call.1} parent=23 // pred_check_branch
          %171 = sbr.rel (%p169) target = $region28
        $region27: #{tpu_custom_call.1} parent=23 // pred_region
          %s172 = sand.u32 %s38, 1
          %s173 = scalar_lea.sflag [#allocation4], %s172
          %s174 = sand.u32 %s38, 1
          %s175 = smul.addr %s174, 32
          %s176 = scalar_lea.vmem [#allocation3], %s175
          %s178 = ssub.s32 512, 512
          %179 = vsyncadd %s173, %s178
          %s180 = smul.addr %s23, 8
          %s181 = smul.addr %s180, 64
          %s182 = scalar_lea.hbm %s0, %s181
          %s183 = sshll.u32 %s176, 4
          %s184 = int_to_ptr.vmem [resolvable:$true] %s183
          %189 = dma.hbm_to_vmem [thread:$0]  %s182, 512, %s184, %s173, 64, 64, 4
        $region28: #{tpu_custom_call.1} parent=23 // pred_fallthru
          _
      $region24: #{tpu_custom_call.1} parent=5 // pred_fallthru
        _
      %p190 = scmp.le.s32.totalorder 1, %s16
      %p191 = scmp.lt.s32.totalorder %s16, 3
      %p192 = pnand %p190, %p191
      %p193 = pneg %p192
      // Predicated region
      $region29: #{tpu_custom_call.1} parent=5 // pred_check
        _
      $region30: #{tpu_custom_call.1} parent=5 // pred_check_branch
        %195 = sbr.rel (%p192) target = $region32
      $region31: #{tpu_custom_call.1} parent=5 // pred_region
        %s196 = ssub.s32 %s16, 1
        %s197 = sand.u32 %s41, 1
        %s198 = scalar_lea.sflag [#allocation4], %s197
        %s199 = sand.u32 %s41, 1
        %s200 = smul.addr %s199, 32
        %s201 = scalar_lea.vmem [#allocation3], %s200
        // Predicated region
        $region33: #{tpu_custom_call.1} parent=31 // pred_check
          %p202 = pneg %p54
        $region34: #{tpu_custom_call.1} parent=31 // pred_check_branch
          %204 = sbr.rel (%p202) target = $region36
        $region35: #{tpu_custom_call.1} parent=31 // pred_region
          %205 = dma.done %s198, 512
        $region36: #{tpu_custom_call.1} parent=31 // pred_fallthru
          _
        // Predicated region
        $region37: #{tpu_custom_call.1} parent=31 // pred_check
          %p206 = pneg %p75
        $region38: #{tpu_custom_call.1} parent=31 // pred_check_branch
          %208 = sbr.rel (%p206) target = $region40
        $region39: #{tpu_custom_call.1} parent=31 // pred_region
          %209 = dma.done [#allocation7], 6144
        $region40: #{tpu_custom_call.1} parent=31 // pred_fallthru
          _
        // Predicated region
        $region41: #{tpu_custom_call.1} parent=31 // pred_check
          %p210 = pneg %p96
        $region42: #{tpu_custom_call.1} parent=31 // pred_check_branch
          %212 = sbr.rel (%p210) target = $region44
        $region43: #{tpu_custom_call.1} parent=31 // pred_region
          %213 = dma.done [#allocation7], 1024
        $region44: #{tpu_custom_call.1} parent=31 // pred_fallthru
          _
        %s214 = sand.u32 %s41, 1
        %s215 = scalar_lea.sflag [#allocation4], %s214
        %s216 = sand.u32 %s41, 1
        %s217 = smul.addr %s216, 32
        %s218 = scalar_lea.vmem [#allocation3], %s217
        %p219 = pneg %p54
        %p220 = pneg %p51
        %p221 = pneg %p75
        %p222 = pneg %p72
        %p223 = pneg %p96
        %p224 = pneg %p93
        %p225 = pneg %p124
        %p226 = pneg %p121
        %s227 = sand.u32 %s111, 1
        %s228 = scalar_lea.sflag [#allocation5], %s227
        %s229 = sand.u32 %s111, 1
        %s230 = smul.addr %s229, 64
        %s231 = scalar_lea.vmem [#allocation9], %s230
        %s232 = smul.u32 8, %s26
        %p234 = scmp.eq.s32.totalorder %s26, 0
        // Predicated region
        $region45: #{tpu_custom_call.1} parent=31 // pred_check
          %p235 = pneg %p234
        $region46: #{tpu_custom_call.1} parent=31 // pred_check_branch
          %237 = sbr.rel (%p235) target = $region48
        $region47: #{tpu_custom_call.1} parent=31 // pred_region
          %v238 = vld [vmem:[%s201] sm:$0xf]
          %v239 = vld [vmem:[%s201 + $0x4] sm:$0xf]
          %v240 = vld [vmem:[%s201 + $0x8] sm:$0xf]
          %v241 = vld [vmem:[%s201 + $0xc] sm:$0xf]
          %v242 = vld [vmem:[%s201 + $0x10] sm:$0xf]
          %v243 = vld [vmem:[%s201 + $0x14] sm:$0xf]
          %v244 = vld [vmem:[%s201 + $0x18] sm:$0xf]
          %v245 = vld [vmem:[%s201 + $0x1c] sm:$0xf]
          %v246 = vld [vmem:[#allocation6] sm:$0xff]
          %v247 = vld [vmem:[#allocation6 + $0x8] sm:$0xff]
          %v248 = vld [vmem:[#allocation6 + $0x10] sm:$0xff]
          %v249 = vld [vmem:[#allocation6 + $0x18] sm:$0xff]
          %v250 = vld [vmem:[#allocation6 + $0x20] sm:$0xff]
          %v251 = vld [vmem:[#allocation6 + $0x28] sm:$0xff]
          %v252 = vld [vmem:[#allocation6 + $0x30] sm:$0xff]
          %v253 = vld [vmem:[#allocation6 + $0x38] sm:$0xff]
          %v254 = vld [vmem:[#allocation6 + $0x40] sm:$0xff]
          %v255 = vld [vmem:[#allocation6 + $0x48] sm:$0xff]
          %v256 = vld [vmem:[#allocation6 + $0x50] sm:$0xff]
          %v257 = vld [vmem:[#allocation6 + $0x58] sm:$0xff]
          %v258 = vld [vmem:[#allocation6 + $0x60] sm:$0xff]
          %v259 = vld [vmem:[#allocation6 + $0x68] sm:$0xff]
          %v260 = vld [vmem:[#allocation6 + $0x70] sm:$0xff]
          %v261 = vld [vmem:[#allocation6 + $0x78] sm:$0xff]
          %v262 = vld [vmem:[#allocation6 + $0x80] sm:$0xff]
          %v263 = vld [vmem:[#allocation6 + $0x88] sm:$0xff]
          %v264 = vld [vmem:[#allocation6 + $0x90] sm:$0xff]
          %v265 = vld [vmem:[#allocation6 + $0x98] sm:$0xff]
          %v266 = vld [vmem:[#allocation6 + $0xa0] sm:$0xff]
          %v267 = vld [vmem:[#allocation6 + $0xa8] sm:$0xff]
          %v268 = vld [vmem:[#allocation6 + $0xb0] sm:$0xff]
          %v269 = vld [vmem:[#allocation6 + $0xb8] sm:$0xff]
          %v270 = vld [vmem:[#allocation6 + $0xc0] sm:$0xff]
          %v271 = vld [vmem:[#allocation6 + $0xc8] sm:$0xff]
          %v272 = vld [vmem:[#allocation6 + $0xd0] sm:$0xff]
          %v273 = vld [vmem:[#allocation6 + $0xd8] sm:$0xff]
          %v274 = vld [vmem:[#allocation6 + $0xe0] sm:$0xff]
          %v275 = vld [vmem:[#allocation6 + $0xe8] sm:$0xff]
          %v276 = vld [vmem:[#allocation6 + $0xf0] sm:$0xff]
          %v277 = vld [vmem:[#allocation6 + $0xf8] sm:$0xff]
          %v278 = vld [vmem:[#allocation6 + $0x100] sm:$0xff]
          %v279 = vld [vmem:[#allocation6 + $0x108] sm:$0xff]
          %v280 = vld [vmem:[#allocation6 + $0x110] sm:$0xff]
          %v281 = vld [vmem:[#allocation6 + $0x118] sm:$0xff]
          %v282 = vld [vmem:[#allocation6 + $0x120] sm:$0xff]
          %v283 = vld [vmem:[#allocation6 + $0x128] sm:$0xff]
          %v284 = vld [vmem:[#allocation6 + $0x130] sm:$0xff]
          %v285 = vld [vmem:[#allocation6 + $0x138] sm:$0xff]
          %v286 = vld [vmem:[#allocation6 + $0x140] sm:$0xff]
          %v287 = vld [vmem:[#allocation6 + $0x148] sm:$0xff]
          %v288 = vld [vmem:[#allocation6 + $0x150] sm:$0xff]
          %v289 = vld [vmem:[#allocation6 + $0x158] sm:$0xff]
          %v290 = vld [vmem:[#allocation6 + $0x160] sm:$0xff]
          %v291 = vld [vmem:[#allocation6 + $0x168] sm:$0xff]
          %v292 = vld [vmem:[#allocation6 + $0x170] sm:$0xff]
          %v293 = vld [vmem:[#allocation6 + $0x178] sm:$0xff]
          %v302 = vunpack.c.l.b16 %v238
          %v303 = vunpack.c.l.b16 %v239
          %v304 = vunpack.c.l.b16 %v240
          %v305 = vunpack.c.l.b16 %v241
          %v306 = vunpack.c.l.b16 %v242
          %v307 = vunpack.c.l.b16 %v243
          %v308 = vunpack.c.l.b16 %v244
          %v309 = vunpack.c.l.b16 %v245
          %v310 = vpack.c.b16 %v303, %v302
          %v311 = vpack.c.b16 %v305, %v304
          %v312 = vpack.c.b16 %v307, %v306
          %v313 = vpack.c.b16 %v309, %v308
          %v366 = vunpack.c.l.b16 %v246
          %v367 = vunpack.c.h.b16 %v246
          %v368 = vunpack.c.l.b16 %v247
          %v369 = vunpack.c.h.b16 %v247
          %v370 = vunpack.c.l.b16 %v248
          %v371 = vunpack.c.h.b16 %v248
          %v372 = vunpack.c.l.b16 %v249
          %v373 = vunpack.c.h.b16 %v249
          %v374 = vunpack.c.l.b16 %v250
          %v375 = vunpack.c.h.b16 %v250
          %v376 = vunpack.c.l.b16 %v251
          %v377 = vunpack.c.h.b16 %v251
          %v378 = vunpack.c.l.b16 %v252
          %v379 = vunpack.c.h.b16 %v252
          %v380 = vunpack.c.l.b16 %v253
          %v381 = vunpack.c.h.b16 %v253
          %v382 = vunpack.c.l.b16 %v254
          %v383 = vunpack.c.h.b16 %v254
          %v384 = vunpack.c.l.b16 %v255
          %v385 = vunpack.c.h.b16 %v255
          %v386 = vunpack.c.l.b16 %v256
          %v387 = vunpack.c.h.b16 %v256
          %v388 = vunpack.c.l.b16 %v257
          %v389 = vunpack.c.h.b16 %v257
          %v390 = vunpack.c.l.b16 %v258
          %v391 = vunpack.c.h.b16 %v258
          %v392 = vunpack.c.l.b16 %v259
          %v393 = vunpack.c.h.b16 %v259
          %v394 = vunpack.c.l.b16 %v260
          %v395 = vunpack.c.h.b16 %v260
          %v396 = vunpack.c.l.b16 %v261
          %v397 = vunpack.c.h.b16 %v261
          %v398 = vunpack.c.l.b16 %v262
          %v399 = vunpack.c.h.b16 %v262
          %v400 = vunpack.c.l.b16 %v263
          %v401 = vunpack.c.h.b16 %v263
          %v402 = vunpack.c.l.b16 %v264
          %v403 = vunpack.c.h.b16 %v264
          %v404 = vunpack.c.l.b16 %v265
          %v405 = vunpack.c.h.b16 %v265
          %v406 = vunpack.c.l.b16 %v266
          %v407 = vunpack.c.h.b16 %v266
          %v408 = vunpack.c.l.b16 %v267
          %v409 = vunpack.c.h.b16 %v267
          %v410 = vunpack.c.l.b16 %v268
          %v411 = vunpack.c.h.b16 %v268
          %v412 = vunpack.c.l.b16 %v269
          %v413 = vunpack.c.h.b16 %v269
          %v414 = vunpack.c.l.b16 %v270
          %v415 = vunpack.c.h.b16 %v270
          %v416 = vunpack.c.l.b16 %v271
          %v417 = vunpack.c.h.b16 %v271
          %v418 = vunpack.c.l.b16 %v272
          %v419 = vunpack.c.h.b16 %v272
          %v420 = vunpack.c.l.b16 %v273
          %v421 = vunpack.c.h.b16 %v273
          %v422 = vunpack.c.l.b16 %v274
          %v423 = vunpack.c.h.b16 %v274
          %v424 = vunpack.c.l.b16 %v275
          %v425 = vunpack.c.h.b16 %v275
          %v426 = vunpack.c.l.b16 %v276
          %v427 = vunpack.c.h.b16 %v276
          %v428 = vunpack.c.l.b16 %v277
          %v429 = vunpack.c.h.b16 %v277
          %v430 = vunpack.c.l.b16 %v278
          %v431 = vunpack.c.h.b16 %v278
          %v432 = vunpack.c.l.b16 %v279
          %v433 = vunpack.c.h.b16 %v279
          %v434 = vunpack.c.l.b16 %v280
          %v435 = vunpack.c.h.b16 %v280
          %v436 = vunpack.c.l.b16 %v281
          %v437 = vunpack.c.h.b16 %v281
          %v438 = vunpack.c.l.b16 %v282
          %v439 = vunpack.c.h.b16 %v282
          %v440 = vunpack.c.l.b16 %v283
          %v441 = vunpack.c.h.b16 %v283
          %v442 = vunpack.c.l.b16 %v284
          %v443 = vunpack.c.h.b16 %v284
          %v444 = vunpack.c.l.b16 %v285
          %v445 = vunpack.c.h.b16 %v285
          %v446 = vunpack.c.l.b16 %v286
          %v447 = vunpack.c.h.b16 %v286
          %v448 = vunpack.c.l.b16 %v287
          %v449 = vunpack.c.h.b16 %v287
          %v450 = vunpack.c.l.b16 %v288
          %v451 = vunpack.c.h.b16 %v288
          %v452 = vunpack.c.l.b16 %v289
          %v453 = vunpack.c.h.b16 %v289
          %v454 = vunpack.c.l.b16 %v290
          %v455 = vunpack.c.h.b16 %v290
          %v456 = vunpack.c.l.b16 %v291
          %v457 = vunpack.c.h.b16 %v291
          %v458 = vunpack.c.l.b16 %v292
          %v459 = vunpack.c.h.b16 %v292
          %v460 = vunpack.c.l.b16 %v293
          %v461 = vunpack.c.h.b16 %v293
          %v462 = vpack.c.b16 %v372, %v366
          %v463 = vpack.c.b16 %v373, %v367
          %v464 = vpack.c.b16 %v374, %v368
          %v465 = vpack.c.b16 %v375, %v369
          %v466 = vpack.c.b16 %v376, %v370
          %v467 = vpack.c.b16 %v377, %v371
          %v468 = vpack.c.b16 %v384, %v378
          %v469 = vpack.c.b16 %v385, %v379
          %v470 = vpack.c.b16 %v386, %v380
          %v471 = vpack.c.b16 %v387, %v381
          %v472 = vpack.c.b16 %v388, %v382
          %v473 = vpack.c.b16 %v389, %v383
          %v474 = vpack.c.b16 %v396, %v390
          %v475 = vpack.c.b16 %v397, %v391
          %v476 = vpack.c.b16 %v398, %v392
          %v477 = vpack.c.b16 %v399, %v393
          %v478 = vpack.c.b16 %v400, %v394
          %v479 = vpack.c.b16 %v401, %v395
          %v480 = vpack.c.b16 %v408, %v402
          %v481 = vpack.c.b16 %v409, %v403
          %v482 = vpack.c.b16 %v410, %v404
          %v483 = vpack.c.b16 %v411, %v405
          %v484 = vpack.c.b16 %v412, %v406
          %v485 = vpack.c.b16 %v413, %v407
          %v486 = vpack.c.b16 %v420, %v414
          %v487 = vpack.c.b16 %v421, %v415
          %v488 = vpack.c.b16 %v422, %v416
          %v489 = vpack.c.b16 %v423, %v417
          %v490 = vpack.c.b16 %v424, %v418
          %v491 = vpack.c.b16 %v425, %v419
          %v492 = vpack.c.b16 %v432, %v426
          %v493 = vpack.c.b16 %v433, %v427
          %v494 = vpack.c.b16 %v434, %v428
          %v495 = vpack.c.b16 %v435, %v429
          %v496 = vpack.c.b16 %v436, %v430
          %v497 = vpack.c.b16 %v437, %v431
          %v498 = vpack.c.b16 %v444, %v438
          %v499 = vpack.c.b16 %v445, %v439
          %v500 = vpack.c.b16 %v446, %v440
          %v501 = vpack.c.b16 %v447, %v441
          %v502 = vpack.c.b16 %v448, %v442
          %v503 = vpack.c.b16 %v449, %v443
          %v504 = vpack.c.b16 %v456, %v450
          %v505 = vpack.c.b16 %v457, %v451
          %v506 = vpack.c.b16 %v458, %v452
          %v507 = vpack.c.b16 %v459, %v453
          %v508 = vpack.c.b16 %v460, %v454
          %v509 = vpack.c.b16 %v461, %v455
          %558 = vmatprep.subr.bf16.mxu0 %v463
          %559 = vmatpush1.bf16.msra.mxu0 %v462
          %560 = vmatprep.subr.bf16.mxu0 %v469
          %561 = vmatpush1.bf16.msra.mxu0 %v468
          %562 = vmatprep.subr.bf16.mxu0 %v475
          %563 = vmatpush1.bf16.msra.mxu0 %v474
          %564 = vmatprep.subr.bf16.mxu0 %v481
          %565 = vmatpush1.bf16.msra.mxu0 %v480
          %566 = vmatprep.subr.bf16.mxu0 %v487
          %567 = vmatpush1.bf16.msra.mxu0 %v486
          %568 = vmatprep.subr.bf16.mxu0 %v493
          %569 = vmatpush1.bf16.msra.mxu0 %v492
          %570 = vmatprep.subr.bf16.mxu0 %v499
          %571 = vmatpush1.bf16.msra.mxu0 %v498
          %572 = vmatprep.subr.bf16.mxu0 %v505
          %573 = vmatpush1.bf16.msra.mxu0 %v504
          %574 = vmatprep.subr.bf16.mxu0 0
          %575 = vmatpush1.bf16.msra.mxu0 0
          %576 = vmatprep.subr.bf16.mxu0 0
          %577 = vmatpush1.bf16.msra.mxu0 0
          %578 = vmatprep.subr.bf16.mxu0 0
          %579 = vmatpush1.bf16.msra.mxu0 0
          %580 = vmatprep.subr.bf16.mxu0 0
          %581 = vmatpush1.bf16.msra.mxu0 0
          %582 = vmatprep.subr.bf16.mxu0 0
          %583 = vmatpush1.bf16.msra.mxu0 0
          %584 = vmatprep.subr.bf16.mxu0 0
          %585 = vmatpush1.bf16.msra.mxu0 0
          %586 = vmatprep.subr.bf16.mxu0 0
          %587 = vmatpush1.bf16.msra.mxu0 0
          %588 = vmatprep.subr.bf16.mxu0 0
          %589 = vmatpush1.bf16.msra.mxu0 0
          %590 = vmatprep.mubr.bf16.mxu0 0
          %591 = vmatmul.mubr.bf16.gmra.mrb[0].mxu0 %v310
          %v592 = vpop.f32.mrb[0].mxu0
          %v593 = vadd.f32 0.0, %v592
          %v594 = vpop.f32.mrb[0].mxu0
          %v595 = vadd.f32 0.0, %v594
          %v596 = vpop.f32.mrb[0].mxu0
          %v597 = vadd.f32 0.0, %v596
          %v598 = vpop.f32.mrb[0].mxu0
          %v599 = vadd.f32 0.0, %v598
          %600 = vmatprep.mubr.bf16.mxu0 0
          %601 = vmatmul.mubr.bf16.gmra.mrb[0].mxu0 %v311
          %v602 = vpop.f32.mrb[0].mxu0
          %v603 = vadd.f32 0.0, %v602
          %v604 = vpop.f32.mrb[0].mxu0
          %v605 = vadd.f32 0.0, %v604
          %v606 = vpop.f32.mrb[0].mxu0
          %v607 = vadd.f32 0.0, %v606
          %v608 = vpop.f32.mrb[0].mxu0
          %v609 = vadd.f32 0.0, %v608
          %610 = vmatprep.mubr.bf16.mxu0 0
          %611 = vmatmul.mubr.bf16.gmra.mrb[0].mxu0 %v312
          %v612 = vpop.f32.mrb[0].mxu0
          %v613 = vadd.f32 0.0, %v612
          %v614 = vpop.f32.mrb[0].mxu0
          %v615 = vadd.f32 0.0, %v614
          %v616 = vpop.f32.mrb[0].mxu0
          %v617 = vadd.f32 0.0, %v616
          %v618 = vpop.f32.mrb[0].mxu0
          %v619 = vadd.f32 0.0, %v618
          %620 = vmatprep.mubr.bf16.mxu0 0
          %621 = vmatmul.mubr.bf16.gmra.mrb[0].mxu0 %v313
          %v622 = vpop.f32.mrb[0].mxu0
          %v623 = vadd.f32 0.0, %v622
          %v624 = vpop.f32.mrb[0].mxu0
          %v625 = vadd.f32 0.0, %v624
          %v626 = vpop.f32.mrb[0].mxu0
          %v627 = vadd.f32 0.0, %v626
          %v628 = vpop.f32.mrb[0].mxu0
          %v629 = vadd.f32 0.0, %v628
          %630 = vdwg.mxu0
          %631 = vmatprep.subr.bf16.mxu0 %v465
          %632 = vmatpush1.bf16.msra.mxu0 %v464
          %633 = vmatprep.subr.bf16.mxu0 %v471
          %634 = vmatpush1.bf16.msra.mxu0 %v470
          %635 = vmatprep.subr.bf16.mxu0 %v477
          %636 = vmatpush1.bf16.msra.mxu0 %v476
          %637 = vmatprep.subr.bf16.mxu0 %v483
          %638 = vmatpush1.bf16.msra.mxu0 %v482
          %639 = vmatprep.subr.bf16.mxu0 %v489
          %640 = vmatpush1.bf16.msra.mxu0 %v488
          %641 = vmatprep.subr.bf16.mxu0 %v495
          %642 = vmatpush1.bf16.msra.mxu0 %v494
          %643 = vmatprep.subr.bf16.mxu0 %v501
          %644 = vmatpush1.bf16.msra.mxu0 %v500
          %645 = vmatprep.subr.bf16.mxu0 %v507
          %646 = vmatpush1.bf16.msra.mxu0 %v506
          %647 = vmatprep.subr.bf16.mxu0 0
          %648 = vmatpush1.bf16.msra.mxu0 0
          %649 = vmatprep.subr.bf16.mxu0 0
          %650 = vmatpush1.bf16.msra.mxu0 0
          %651 = vmatprep.subr.bf16.mxu0 0
          %652 = vmatpush1.bf16.msra.mxu0 0
          %653 = vmatprep.subr.bf16.mxu0 0
          %654 = vmatpush1.bf16.msra.mxu0 0
          %655 = vmatprep.subr.bf16.mxu0 0
          %656 = vmatpush1.bf16.msra.mxu0 0
          %657 = vmatprep.subr.bf16.mxu0 0
          %658 = vmatpush1.bf16.msra.mxu0 0
          %659 = vmatprep.subr.bf16.mxu0 0
          %660 = vmatpush1.bf16.msra.mxu0 0
          %661 = vmatprep.subr.bf16.mxu0 0
          %662 = vmatpush1.bf16.msra.mxu0 0
          %663 = vmatprep.mubr.bf16.mxu0 0
          %664 = vmatmul.mubr.bf16.gmra.mrb[0].mxu0 %v310
          %v665 = vpop.f32.mrb[0].mxu0
          %v666 = vadd.f32 0.0, %v665
          %v667 = vpop.f32.mrb[0].mxu0
          %v668 = vadd.f32 0.0, %v667
          %v669 = vpop.f32.mrb[0].mxu0
          %v670 = vadd.f32 0.0, %v669
          %v671 = vpop.f32.mrb[0].mxu0
          %v672 = vadd.f32 0.0, %v671
          %673 = vmatprep.mubr.bf16.mxu0 0
          %674 = vmatmul.mubr.bf16.gmra.mrb[0].mxu0 %v311
          %v675 = vpop.f32.mrb[0].mxu0
          %v676 = vadd.f32 0.0, %v675
          %v677 = vpop.f32.mrb[0].mxu0
          %v678 = vadd.f32 0.0, %v677
          %v679 = vpop.f32.mrb[0].mxu0
          %v680 = vadd.f32 0.0, %v679
          %v681 = vpop.f32.mrb[0].mxu0
          %v682 = vadd.f32 0.0, %v681
          %683 = vmatprep.mubr.bf16.mxu0 0
          %684 = vmatmul.mubr.bf16.gmra.mrb[0].mxu0 %v312
          %v685 = vpop.f32.mrb[0].mxu0
          %v686 = vadd.f32 0.0, %v685
          %v687 = vpop.f32.mrb[0].mxu0
          %v688 = vadd.f32 0.0, %v687
          %v689 = vpop.f32.mrb[0].mxu0
          %v690 = vadd.f32 0.0, %v689
          %v691 = vpop.f32.mrb[0].mxu0
          %v692 = vadd.f32 0.0, %v691
          %693 = vmatprep.mubr.bf16.mxu0 0
          %694 = vmatmul.mubr.bf16.gmra.mrb[0].mxu0 %v313
          %v695 = vpop.f32.mrb[0].mxu0
          %v696 = vadd.f32 0.0, %v695
          %v697 = vpop.f32.mrb[0].mxu0
          %v698 = vadd.f32 0.0, %v697
          %v699 = vpop.f32.mrb[0].mxu0
          %v700 = vadd.f32 0.0, %v699
          %v701 = vpop.f32.mrb[0].mxu0
          %v702 = vadd.f32 0.0, %v701
          %703 = vdwg.mxu0
          %704 = vmatprep.subr.bf16.mxu0 %v467
          %705 = vmatpush1.bf16.msra.mxu0 %v466
          %706 = vmatprep.subr.bf16.mxu0 %v473
          %707 = vmatpush1.bf16.msra.mxu0 %v472
          %708 = vmatprep.subr.bf16.mxu0 %v479
          %709 = vmatpush1.bf16.msra.mxu0 %v478
          %710 = vmatprep.subr.bf16.mxu0 %v485
          %711 = vmatpush1.bf16.msra.mxu0 %v484
          %712 = vmatprep.subr.bf16.mxu0 %v491
          %713 = vmatpush1.bf16.msra.mxu0 %v490
          %714 = vmatprep.subr.bf16.mxu0 %v497
          %715 = vmatpush1.bf16.msra.mxu0 %v496
          %716 = vmatprep.subr.bf16.mxu0 %v503
          %717 = vmatpush1.bf16.msra.mxu0 %v502
          %718 = vmatprep.subr.bf16.mxu0 %v509
          %719 = vmatpush1.bf16.msra.mxu0 %v508
          %720 = vmatprep.subr.bf16.mxu0 0
          %721 = vmatpush1.bf16.msra.mxu0 0
          %722 = vmatprep.subr.bf16.mxu0 0
          %723 = vmatpush1.bf16.msra.mxu0 0
          %724 = vmatprep.subr.bf16.mxu0 0
          %725 = vmatpush1.bf16.msra.mxu0 0
          %726 = vmatprep.subr.bf16.mxu0 0
          %727 = vmatpush1.bf16.msra.mxu0 0
          %728 = vmatprep.subr.bf16.mxu0 0
          %729 = vmatpush1.bf16.msra.mxu0 0
          %730 = vmatprep.subr.bf16.mxu0 0
          %731 = vmatpush1.bf16.msra.mxu0 0
          %732 = vmatprep.subr.bf16.mxu0 0
          %733 = vmatpush1.bf16.msra.mxu0 0
          %734 = vmatprep.subr.bf16.mxu0 0
          %735 = vmatpush1.bf16.msra.mxu0 0
          %736 = vmatprep.mubr.bf16.mxu0 0
          %737 = vmatmul.mubr.bf16.gmra.mrb[0].mxu0 %v310
          %v738 = vpop.f32.mrb[0].mxu0
          %v739 = vadd.f32 0.0, %v738
          %v740 = vpop.f32.mrb[0].mxu0
          %v741 = vadd.f32 0.0, %v740
          %v742 = vpop.f32.mrb[0].mxu0
          %v743 = vadd.f32 0.0, %v742
          %v744 = vpop.f32.mrb[0].mxu0
          %v745 = vadd.f32 0.0, %v744
          %746 = vmatprep.mubr.bf16.mxu0 0
          %747 = vmatmul.mubr.bf16.gmra.mrb[0].mxu0 %v311
          %v748 = vpop.f32.mrb[0].mxu0
          %v749 = vadd.f32 0.0, %v748
          %v750 = vpop.f32.mrb[0].mxu0
          %v751 = vadd.f32 0.0, %v750
          %v752 = vpop.f32.mrb[0].mxu0
          %v753 = vadd.f32 0.0, %v752
          %v754 = vpop.f32.mrb[0].mxu0
          %v755 = vadd.f32 0.0, %v754
          %756 = vmatprep.mubr.bf16.mxu0 0
          %757 = vmatmul.mubr.bf16.gmra.mrb[0].mxu0 %v312
          %v758 = vpop.f32.mrb[0].mxu0
          %v759 = vadd.f32 0.0, %v758
          %v760 = vpop.f32.mrb[0].mxu0
          %v761 = vadd.f32 0.0, %v760
          %v762 = vpop.f32.mrb[0].mxu0
          %v763 = vadd.f32 0.0, %v762
          %v764 = vpop.f32.mrb[0].mxu0
          %v765 = vadd.f32 0.0, %v764
          %766 = vmatprep.mubr.bf16.mxu0 0
          %767 = vmatmul.mubr.bf16.gmra.mrb[0].mxu0 %v313
          %v768 = vpop.f32.mrb[0].mxu0
          %v769 = vadd.f32 0.0, %v768
          %v770 = vpop.f32.mrb[0].mxu0
          %v771 = vadd.f32 0.0, %v770
          %v772 = vpop.f32.mrb[0].mxu0
          %v773 = vadd.f32 0.0, %v772
          %v774 = vpop.f32.mrb[0].mxu0
          %v775 = vadd.f32 0.0, %v774
          %776 = vdwg.mxu0
          %v777 = vld [vmem:[#allocation8] sm:$0xff]
          %v778 = vld [vmem:[#allocation8 + $0x8] sm:$0xff]
          %v779 = vld [vmem:[#allocation8 + $0x10] sm:$0xff]
          %v780 = vld [vmem:[#allocation8 + $0x18] sm:$0xff]
          %v781 = vld [vmem:[#allocation8 + $0x20] sm:$0xff]
          %v782 = vld [vmem:[#allocation8 + $0x28] sm:$0xff]
          %v783 = vld [vmem:[#allocation8 + $0x30] sm:$0xff]
          %v784 = vld [vmem:[#allocation8 + $0x38] sm:$0xff]
          %v785 = vunpack.c.l.bf16 %v777
          %v786 = vunpack.c.h.bf16 %v777
          %v787 = vunpack.c.l.bf16 %v778
          %v788 = vunpack.c.h.bf16 %v778
          %v789 = vunpack.c.l.bf16 %v779
          %v790 = vunpack.c.h.bf16 %v779
          %v791 = vunpack.c.l.bf16 %v780
          %v792 = vunpack.c.h.bf16 %v780
          %v793 = vunpack.c.l.bf16 %v781
          %v794 = vunpack.c.h.bf16 %v781
          %v795 = vunpack.c.l.bf16 %v782
          %v796 = vunpack.c.h.bf16 %v782
          %v797 = vunpack.c.l.bf16 %v783
          %v798 = vunpack.c.h.bf16 %v783
          %v799 = vunpack.c.l.bf16 %v784
          %v800 = vunpack.c.h.bf16 %v784
          %v801 = vadd.f32 %v666, %v785
          %v802 = vadd.f32 %v668, %v786
          %v803 = vadd.f32 %v670, %v787
          %v804 = vadd.f32 %v672, %v788
          %v805 = vadd.f32 %v676, %v789
          %v806 = vadd.f32 %v678, %v790
          %v807 = vadd.f32 %v680, %v791
          %v808 = vadd.f32 %v682, %v792
          %v809 = vadd.f32 %v686, %v793
          %v810 = vadd.f32 %v688, %v794
          %v811 = vadd.f32 %v690, %v795
          %v812 = vadd.f32 %v692, %v796
          %v813 = vadd.f32 %v696, %v797
          %v814 = vadd.f32 %v698, %v798
          %v815 = vadd.f32 %v700, %v799
          %v816 = vadd.f32 %v702, %v800
          %v817 = vpack.c.bf16 %v597, %v593
          %v818 = vpack.c.bf16 %v599, %v595
          %v819 = vpack.c.bf16 %v607, %v603
          %v820 = vpack.c.bf16 %v609, %v605
          %v821 = vpack.c.bf16 %v617, %v613
          %v822 = vpack.c.bf16 %v619, %v615
          %v823 = vpack.c.bf16 %v627, %v623
          %v824 = vpack.c.bf16 %v629, %v625
          %825 = vst [vmem:[#allocation2] sm:$0xff] %v817
          %826 = vst [vmem:[#allocation2 + $0x8] sm:$0xff] %v818
          %827 = vst [vmem:[#allocation2 + $0x30] sm:$0xff] %v819
          %828 = vst [vmem:[#allocation2 + $0x38] sm:$0xff] %v820
          %829 = vst [vmem:[#allocation2 + $0x60] sm:$0xff] %v821
          %830 = vst [vmem:[#allocation2 + $0x68] sm:$0xff] %v822
          %831 = vst [vmem:[#allocation2 + $0x90] sm:$0xff] %v823
          %832 = vst [vmem:[#allocation2 + $0x98] sm:$0xff] %v824
          %v833 = vpack.c.bf16 %v803, %v801
          %v834 = vpack.c.bf16 %v804, %v802
          %v835 = vpack.c.bf16 %v807, %v805
          %v836 = vpack.c.bf16 %v808, %v806
          %v837 = vpack.c.bf16 %v811, %v809
          %v838 = vpack.c.bf16 %v812, %v810
          %v839 = vpack.c.bf16 %v815, %v813
          %v840 = vpack.c.bf16 %v816, %v814
          %841 = vst [vmem:[#allocation2 + $0x10] sm:$0xff] %v833
          %842 = vst [vmem:[#allocation2 + $0x18] sm:$0xff] %v834
          %843 = vst [vmem:[#allocation2 + $0x40] sm:$0xff] %v835
          %844 = vst [vmem:[#allocation2 + $0x48] sm:$0xff] %v836
          %845 = vst [vmem:[#allocation2 + $0x70] sm:$0xff] %v837
          %846 = vst [vmem:[#allocation2 + $0x78] sm:$0xff] %v838
          %847 = vst [vmem:[#allocation2 + $0xa0] sm:$0xff] %v839
          %848 = vst [vmem:[#allocation2 + $0xa8] sm:$0xff] %v840
          %v849 = vpack.c.bf16 %v743, %v739
          %v850 = vpack.c.bf16 %v745, %v741
          %v851 = vpack.c.bf16 %v753, %v749
          %v852 = vpack.c.bf16 %v755, %v751
          %v853 = vpack.c.bf16 %v763, %v759
          %v854 = vpack.c.bf16 %v765, %v761
          %v855 = vpack.c.bf16 %v773, %v769
          %v856 = vpack.c.bf16 %v775, %v771
          %857 = vst [vmem:[#allocation2 + $0x20] sm:$0xff] %v849
          %858 = vst [vmem:[#allocation2 + $0x28] sm:$0xff] %v850
          %859 = vst [vmem:[#allocation2 + $0x50] sm:$0xff] %v851
          %860 = vst [vmem:[#allocation2 + $0x58] sm:$0xff] %v852
          %861 = vst [vmem:[#allocation2 + $0x80] sm:$0xff] %v853
          %862 = vst [vmem:[#allocation2 + $0x88] sm:$0xff] %v854
          %863 = vst [vmem:[#allocation2 + $0xb0] sm:$0xff] %v855
          %864 = vst [vmem:[#allocation2 + $0xb8] sm:$0xff] %v856
        $region48: #{tpu_custom_call.1} parent=31 // pred_fallthru
          _
        %s865 = smul.u32 %s26, 64
        %s866 = sshra.s32 %s865, 4
        %s867 = sand.u32 %s865, 15
        %s868 = smul.u32 %s866, 6
        %s869 = smul.addr %s868, 8
        %s870 = scalar_lea.vmem [#allocation2], %s869
        %v871 = vld [vmem:[%s870] sm:$0xff]
        %v872 = vld [vmem:[%s870 + $0x30] sm:$0xff]
        %v873 = vld [vmem:[%s870 + $0x60] sm:$0xff]
        %v874 = vld [vmem:[%s870 + $0x90] sm:$0xff]
        %v875 = vld [vmem:[#allocation2 + $0x10] sm:$0xff]
        %v876 = vld [vmem:[#allocation2 + $0x40] sm:$0xff]
        %v877 = vld [vmem:[#allocation2 + $0x70] sm:$0xff]
        %v878 = vld [vmem:[#allocation2 + $0xa0] sm:$0xff]
        %v879 = vld [vmem:[#allocation2 + $0x20] sm:$0xff]
        %v880 = vld [vmem:[#allocation2 + $0x50] sm:$0xff]
        %v881 = vld [vmem:[#allocation2 + $0x80] sm:$0xff]
        %v882 = vld [vmem:[#allocation2 + $0xb0] sm:$0xff]
        %883 = vmatprep.subr.bf16.mxu0 0
        %884 = vmatpush1.bf16.xpose.msra.mxu0 %v875
        %885 = vmatprep.subr.bf16.mxu0 0
        %886 = vmatpush1.bf16.xpose.msra.mxu0 %v876
        %887 = vmatprep.subr.bf16.mxu0 0
        %888 = vmatpush1.bf16.xpose.msra.mxu0 %v877
        %889 = vmatprep.subr.bf16.mxu0 0
        %890 = vmatpush1.bf16.xpose.msra.mxu0 %v878
        %891 = vmatprep.subr.bf16.mxu0 0
        %892 = vmatpush1.bf16.xpose.msra.mxu0 0
        %893 = vmatprep.subr.bf16.mxu0 0
        %894 = vmatpush1.bf16.xpose.msra.mxu0 0
        %895 = vmatprep.subr.bf16.mxu0 0
        %896 = vmatpush1.bf16.xpose.msra.mxu0 0
        %897 = vmatprep.subr.bf16.mxu0 0
        %898 = vmatpush1.bf16.xpose.msra.mxu0 0
        %899 = vmatprep.subr.bf16.mxu0 0
        %900 = vmatpush1.bf16.xpose.msra.mxu0 0
        %901 = vmatprep.subr.bf16.mxu0 0
        %902 = vmatpush1.bf16.xpose.msra.mxu0 0
        %903 = vmatprep.subr.bf16.mxu0 0
        %904 = vmatpush1.bf16.xpose.msra.mxu0 0
        %905 = vmatprep.subr.bf16.mxu0 0
        %906 = vmatpush1.bf16.xpose.msra.mxu0 0
        %907 = vmatprep.subr.bf16.mxu0 0
        %908 = vmatpush1.bf16.xpose.msra.mxu0 0
        %909 = vmatprep.subr.bf16.mxu0 0
        %910 = vmatpush1.bf16.xpose.msra.mxu0 0
        %911 = vmatprep.subr.bf16.mxu0 0
        %912 = vmatpush1.bf16.xpose.msra.mxu0 0
        %913 = vmatprep.subr.bf16.mxu0 0
        %914 = vmatpush1.bf16.xpose.msra.mxu0 0
        %915 = vmatprep.mubr.bf16.mxu0 0
        %916 = vmatmul.mubr.bf16.gmra.mrb[0].mxu0 %v871
        %v917 = vpop.f32.mrb[0].mxu0
        %v918 = vadd.f32 0.0, %v917
        %v919 = vpop.f32.mrb[0].mxu0
        %v920 = vpop.f32.mrb[0].mxu0
        %v921 = vadd.f32 0.0, %v920
        %v922 = vpop.f32.mrb[0].mxu0
        %923 = vmatprep.mubr.bf16.mxu0 0
        %924 = vmatmul.mubr.bf16.gmra.mrb[0].mxu0 %v872
        %v925 = vpop.f32.mrb[0].mxu0
        %v926 = vadd.f32 0.0, %v925
        %v927 = vpop.f32.mrb[0].mxu0
        %v928 = vpop.f32.mrb[0].mxu0
        %v929 = vadd.f32 0.0, %v928
        %v930 = vpop.f32.mrb[0].mxu0
        %931 = vmatprep.mubr.bf16.mxu0 0
        %932 = vmatmul.mubr.bf16.gmra.mrb[0].mxu0 %v873
        %v933 = vpop.f32.mrb[0].mxu0
        %v934 = vadd.f32 0.0, %v933
        %v935 = vpop.f32.mrb[0].mxu0
        %v936 = vpop.f32.mrb[0].mxu0
        %v937 = vadd.f32 0.0, %v936
        %v938 = vpop.f32.mrb[0].mxu0
        %939 = vmatprep.mubr.bf16.mxu0 0
        %940 = vmatmul.mubr.bf16.gmra.mrb[0].mxu0 %v874
        %v941 = vpop.f32.mrb[0].mxu0
        %v942 = vadd.f32 0.0, %v941
        %v943 = vpop.f32.mrb[0].mxu0
        %v944 = vpop.f32.mrb[0].mxu0
        %v945 = vadd.f32 0.0, %v944
        %v946 = vpop.f32.mrb[0].mxu0
        %947 = vdwg.mxu0
        %vm948 = vcmask 523264
        %v949 = vsel %vm948, %v918, -inf
        %950 = vmax.xlane.f32.xlu0 %v949
        %v951 = vpop.xlane.xlu0 %950
        %v952 = vsel %vm948, %v921, -inf
        %953 = vmax.xlane.f32.xlu0 %v952
        %v954 = vpop.xlane.xlu0 %953
        %v955 = vsel %vm948, %v926, -inf
        %956 = vmax.xlane.f32.xlu0 %v955
        %v957 = vpop.xlane.xlu0 %956
        %v958 = vsel %vm948, %v929, -inf
        %959 = vmax.xlane.f32.xlu0 %v958
        %v960 = vpop.xlane.xlu0 %959
        %v961 = vsel %vm948, %v934, -inf
        %962 = vmax.xlane.f32.xlu0 %v961
        %v963 = vpop.xlane.xlu0 %962
        %v964 = vsel %vm948, %v937, -inf
        %965 = vmax.xlane.f32.xlu0 %v964
        %v966 = vpop.xlane.xlu0 %965
        %v967 = vsel %vm948, %v942, -inf
        %968 = vmax.xlane.f32.xlu0 %v967
        %v969 = vpop.xlane.xlu0 %968
        %v970 = vsel %vm948, %v945, -inf
        %971 = vmax.xlane.f32.xlu0 %v970
        %v972 = vpop.xlane.xlu0 %971
        %v973 = vsub.f32 %v918, %v951
        %v974 = vsub.f32 %v921, %v954
        %v975 = vsub.f32 %v926, %v957
        %v976 = vsub.f32 %v929, %v960
        %v977 = vsub.f32 %v934, %v963
        %v978 = vsub.f32 %v937, %v966
        %v979 = vsub.f32 %v942, %v969
        %v980 = vsub.f32 %v945, %v972
        %v981 = vpack.c.bf16 %v974, %v973
        %v982 = vpack.c.bf16 %v976, %v975
        %v983 = vpack.c.bf16 %v978, %v977
        %v984 = vpack.c.bf16 %v980, %v979
        %v986 = vmul.bf16 %v981, 1069105081
        %v987 = vpow.bf16.pop %v986
        %v989 = vmul.bf16 %v982, 1069105081
        %v990 = vpow.bf16.pop %v989
        %v992 = vmul.bf16 %v983, 1069105081
        %v993 = vpow.bf16.pop %v992
        %v995 = vmul.bf16 %v984, 1069105081
        %v996 = vpow.bf16.pop %v995
        %v997 = vunpack.c.l.bf16 %v987
        %v998 = vunpack.c.h.bf16 %v987
        %v999 = vunpack.c.l.bf16 %v990
        %v1000 = vunpack.c.h.bf16 %v990
        %v1001 = vunpack.c.l.bf16 %v993
        %v1002 = vunpack.c.h.bf16 %v993
        %v1003 = vunpack.c.l.bf16 %v996
        %v1004 = vunpack.c.h.bf16 %v996
        %v1005 = vsel %vm948, %v997, 0.0
        %1006 = vadd.xlane.f32.xlu0 %v1005
        %v1007 = vpop.xlane.xlu0 %1006
        %v1008 = vsel %vm948, %v998, 0.0
        %1009 = vadd.xlane.f32.xlu0 %v1008
        %v1010 = vpop.xlane.xlu0 %1009
        %v1011 = vsel %vm948, %v999, 0.0
        %1012 = vadd.xlane.f32.xlu0 %v1011
        %v1013 = vpop.xlane.xlu0 %1012
        %v1014 = vsel %vm948, %v1000, 0.0
        %1015 = vadd.xlane.f32.xlu0 %v1014
        %v1016 = vpop.xlane.xlu0 %1015
        %v1017 = vsel %vm948, %v1001, 0.0
        %1018 = vadd.xlane.f32.xlu0 %v1017
        %v1019 = vpop.xlane.xlu0 %1018
        %v1020 = vsel %vm948, %v1002, 0.0
        %1021 = vadd.xlane.f32.xlu0 %v1020
        %v1022 = vpop.xlane.xlu0 %1021
        %v1023 = vsel %vm948, %v1003, 0.0
        %1024 = vadd.xlane.f32.xlu0 %v1023
        %v1025 = vpop.xlane.xlu0 %1024
        %v1026 = vsel %vm948, %v1004, 0.0
        %1027 = vadd.xlane.f32.xlu0 %v1026
        %v1028 = vpop.xlane.xlu0 %1027
        %v1029 = vrcp.pop %v1007
        %v1030 = vrcp.pop %v1010
        %v1031 = vrcp.pop %v1013
        %v1032 = vrcp.pop %v1016
        %v1033 = vrcp.pop %v1019
        %v1034 = vrcp.pop %v1022
        %v1035 = vrcp.pop %v1025
        %v1036 = vrcp.pop %v1028
        %v1038 = vsel %vm948, %v987, 0
        %v1041 = vsel %vm948, %v990, 0
        %v1044 = vsel %vm948, %v993, 0
        %v1047 = vsel %vm948, %v996, 0
        %1049 = vmatprep.subr.bf16.mxu0 0
        %1050 = vmatpush1.bf16.msra.mxu0 %v879
        %1051 = vmatprep.subr.bf16.mxu0 0
        %1052 = vmatpush1.bf16.msra.mxu0 %v880
        %1053 = vmatprep.subr.bf16.mxu0 0
        %1054 = vmatpush1.bf16.msra.mxu0 %v881
        %1055 = vmatprep.subr.bf16.mxu0 0
        %1056 = vmatpush1.bf16.msra.mxu0 %v882
        %1057 = vmatprep.subr.bf16.mxu0 0
        %1058 = vmatpush1.bf16.msra.mxu0 0
        %1059 = vmatprep.subr.bf16.mxu0 0
        %1060 = vmatpush1.bf16.msra.mxu0 0
        %1061 = vmatprep.subr.bf16.mxu0 0
        %1062 = vmatpush1.bf16.msra.mxu0 0
        %1063 = vmatprep.subr.bf16.mxu0 0
        %1064 = vmatpush1.bf16.msra.mxu0 0
        %1065 = vmatprep.subr.bf16.mxu0 0
        %1066 = vmatpush1.bf16.msra.mxu0 0
        %1067 = vmatprep.subr.bf16.mxu0 0
        %1068 = vmatpush1.bf16.msra.mxu0 0
        %1069 = vmatprep.subr.bf16.mxu0 0
        %1070 = vmatpush1.bf16.msra.mxu0 0
        %1071 = vmatprep.subr.bf16.mxu0 0
        %1072 = vmatpush1.bf16.msra.mxu0 0
        %1073 = vmatprep.subr.bf16.mxu0 0
        %1074 = vmatpush1.bf16.msra.mxu0 0
        %1075 = vmatprep.subr.bf16.mxu0 0
        %1076 = vmatpush1.bf16.msra.mxu0 0
        %1077 = vmatprep.subr.bf16.mxu0 0
        %1078 = vmatpush1.bf16.msra.mxu0 0
        %1079 = vmatprep.subr.bf16.mxu0 0
        %1080 = vmatpush1.bf16.msra.mxu0 0
        %1081 = vmatprep.mubr.bf16.mxu0 0
        %1082 = vmatmul.mubr.bf16.gmra.mrb[0].mxu0 %v1038
        %v1083 = vpop.f32.mrb[0].mxu0
        %v1084 = vadd.f32 0.0, %v1083
        %v1085 = vpop.f32.mrb[0].mxu0
        %v1086 = vpop.f32.mrb[0].mxu0
        %v1087 = vadd.f32 0.0, %v1086
        %v1088 = vpop.f32.mrb[0].mxu0
        %1089 = vmatprep.mubr.bf16.mxu0 0
        %1090 = vmatmul.mubr.bf16.gmra.mrb[0].mxu0 %v1041
        %v1091 = vpop.f32.mrb[0].mxu0
        %v1092 = vadd.f32 0.0, %v1091
        %v1093 = vpop.f32.mrb[0].mxu0
        %v1094 = vpop.f32.mrb[0].mxu0
        %v1095 = vadd.f32 0.0, %v1094
        %v1096 = vpop.f32.mrb[0].mxu0
        %1097 = vmatprep.mubr.bf16.mxu0 0
        %1098 = vmatmul.mubr.bf16.gmra.mrb[0].mxu0 %v1044
        %v1099 = vpop.f32.mrb[0].mxu0
        %v1100 = vadd.f32 0.0, %v1099
        %v1101 = vpop.f32.mrb[0].mxu0
        %v1102 = vpop.f32.mrb[0].mxu0
        %v1103 = vadd.f32 0.0, %v1102
        %v1104 = vpop.f32.mrb[0].mxu0
        %1105 = vmatprep.mubr.bf16.mxu0 0
        %1106 = vmatmul.mubr.bf16.gmra.mrb[0].mxu0 %v1047
        %v1107 = vpop.f32.mrb[0].mxu0
        %v1108 = vadd.f32 0.0, %v1107
        %v1109 = vpop.f32.mrb[0].mxu0
        %v1110 = vpop.f32.mrb[0].mxu0
        %v1111 = vadd.f32 0.0, %v1110
        %v1112 = vpop.f32.mrb[0].mxu0
        %1113 = vdwg.mxu0
        %v1114 = vmul.f32 %v1084, %v1029
        %v1115 = vmul.f32 %v1087, %v1030
        %v1116 = vmul.f32 %v1092, %v1031
        %v1117 = vmul.f32 %v1095, %v1032
        %v1118 = vmul.f32 %v1100, %v1033
        %v1119 = vmul.f32 %v1103, %v1034
        %v1120 = vmul.f32 %v1108, %v1035
        %v1121 = vmul.f32 %v1111, %v1036
        %v1122 = vpack.c.bf16 %v1115, %v1114
        %v1123 = vpack.c.bf16 %v1117, %v1116
        %v1124 = vpack.c.bf16 %v1119, %v1118
        %v1125 = vpack.c.bf16 %v1121, %v1120
        %v1130 = vunpack.c.l.b16 %v1122
        %v1131 = vunpack.c.h.b16 %v1122
        %v1132 = vunpack.c.l.b16 %v1123
        %v1133 = vunpack.c.h.b16 %v1123
        %v1134 = vunpack.c.l.b16 %v1124
        %v1135 = vunpack.c.h.b16 %v1124
        %v1136 = vunpack.c.l.b16 %v1125
        %v1137 = vunpack.c.h.b16 %v1125
        %v1138 = vpack.c.b16 %v1130, %v1130
        %v1139 = vpack.c.b16 %v1131, %v1131
        %v1140 = vpack.c.b16 %v1132, %v1132
        %v1141 = vpack.c.b16 %v1133, %v1133
        %v1142 = vpack.c.b16 %v1134, %v1134
        %v1143 = vpack.c.b16 %v1135, %v1135
        %v1144 = vpack.c.b16 %v1136, %v1136
        %v1145 = vpack.c.b16 %v1137, %v1137
        %1154 = vst [vmem:[%s231] sm:$0xf] %v1138
        %1155 = vst [vmem:[%s231 + $0x8] sm:$0xf] %v1139
        %1156 = vst [vmem:[%s231 + $0x10] sm:$0xf] %v1140
        %1157 = vst [vmem:[%s231 + $0x18] sm:$0xf] %v1141
        %1158 = vst [vmem:[%s231 + $0x20] sm:$0xf] %v1142
        %1159 = vst [vmem:[%s231 + $0x28] sm:$0xf] %v1143
        %1160 = vst [vmem:[%s231 + $0x30] sm:$0xf] %v1144
        %1161 = vst [vmem:[%s231 + $0x38] sm:$0xf] %v1145
        %v1162 = vld [vmem:[%s870 + $0x8] sm:$0xff]
        %v1163 = vld [vmem:[%s870 + $0x38] sm:$0xff]
        %v1164 = vld [vmem:[%s870 + $0x68] sm:$0xff]
        %v1165 = vld [vmem:[%s870 + $0x98] sm:$0xff]
        %v1166 = vld [vmem:[#allocation2 + $0x18] sm:$0xff]
        %v1167 = vld [vmem:[#allocation2 + $0x48] sm:$0xff]
        %v1168 = vld [vmem:[#allocation2 + $0x78] sm:$0xff]
        %v1169 = vld [vmem:[#allocation2 + $0xa8] sm:$0xff]
        %v1170 = vld [vmem:[#allocation2 + $0x28] sm:$0xff]
        %v1171 = vld [vmem:[#allocation2 + $0x58] sm:$0xff]
        %v1172 = vld [vmem:[#allocation2 + $0x88] sm:$0xff]
        %v1173 = vld [vmem:[#allocation2 + $0xb8] sm:$0xff]
        %1174 = vmatprep.subr.bf16.mxu0 0
        %1175 = vmatpush1.bf16.xpose.msra.mxu0 %v1166
        %1176 = vmatprep.subr.bf16.mxu0 0
        %1177 = vmatpush1.bf16.xpose.msra.mxu0 %v1167
        %1178 = vmatprep.subr.bf16.mxu0 0
        %1179 = vmatpush1.bf16.xpose.msra.mxu0 %v1168
        %1180 = vmatprep.subr.bf16.mxu0 0
        %1181 = vmatpush1.bf16.xpose.msra.mxu0 %v1169
        %1182 = vmatprep.subr.bf16.mxu0 0
        %1183 = vmatpush1.bf16.xpose.msra.mxu0 0
        %1184 = vmatprep.subr.bf16.mxu0 0
        %1185 = vmatpush1.bf16.xpose.msra.mxu0 0
        %1186 = vmatprep.subr.bf16.mxu0 0
        %1187 = vmatpush1.bf16.xpose.msra.mxu0 0
        %1188 = vmatprep.subr.bf16.mxu0 0
        %1189 = vmatpush1.bf16.xpose.msra.mxu0 0
        %1190 = vmatprep.subr.bf16.mxu0 0
        %1191 = vmatpush1.bf16.xpose.msra.mxu0 0
        %1192 = vmatprep.subr.bf16.mxu0 0
        %1193 = vmatpush1.bf16.xpose.msra.mxu0 0
        %1194 = vmatprep.subr.bf16.mxu0 0
        %1195 = vmatpush1.bf16.xpose.msra.mxu0 0
        %1196 = vmatprep.subr.bf16.mxu0 0
        %1197 = vmatpush1.bf16.xpose.msra.mxu0 0
        %1198 = vmatprep.subr.bf16.mxu0 0
        %1199 = vmatpush1.bf16.xpose.msra.mxu0 0
        %1200 = vmatprep.subr.bf16.mxu0 0
        %1201 = vmatpush1.bf16.xpose.msra.mxu0 0
        %1202 = vmatprep.subr.bf16.mxu0 0
        %1203 = vmatpush1.bf16.xpose.msra.mxu0 0
        %1204 = vmatprep.subr.bf16.mxu0 0
        %1205 = vmatpush1.bf16.xpose.msra.mxu0 0
        %1206 = vmatprep.mubr.bf16.mxu0 0
        %1207 = vmatmul.mubr.bf16.gmra.mrb[0].mxu0 %v1162
        %v1208 = vpop.f32.mrb[0].mxu0
        %v1209 = vadd.f32 0.0, %v1208
        %v1210 = vpop.f32.mrb[0].mxu0
        %v1211 = vpop.f32.mrb[0].mxu0
        %v1212 = vadd.f32 0.0, %v1211
        %v1213 = vpop.f32.mrb[0].mxu0
        %1214 = vmatprep.mubr.bf16.mxu0 0
        %1215 = vmatmul.mubr.bf16.gmra.mrb[0].mxu0 %v1163
        %v1216 = vpop.f32.mrb[0].mxu0
        %v1217 = vadd.f32 0.0, %v1216
        %v1218 = vpop.f32.mrb[0].mxu0
        %v1219 = vpop.f32.mrb[0].mxu0
        %v1220 = vadd.f32 0.0, %v1219
        %v1221 = vpop.f32.mrb[0].mxu0
        %1222 = vmatprep.mubr.bf16.mxu0 0
        %1223 = vmatmul.mubr.bf16.gmra.mrb[0].mxu0 %v1164
        %v1224 = vpop.f32.mrb[0].mxu0
        %v1225 = vadd.f32 0.0, %v1224
        %v1226 = vpop.f32.mrb[0].mxu0
        %v1227 = vpop.f32.mrb[0].mxu0
        %v1228 = vadd.f32 0.0, %v1227
        %v1229 = vpop.f32.mrb[0].mxu0
        %1230 = vmatprep.mubr.bf16.mxu0 0
        %1231 = vmatmul.mubr.bf16.gmra.mrb[0].mxu0 %v1165
        %v1232 = vpop.f32.mrb[0].mxu0
        %v1233 = vadd.f32 0.0, %v1232
        %v1234 = vpop.f32.mrb[0].mxu0
        %v1235 = vpop.f32.mrb[0].mxu0
        %v1236 = vadd.f32 0.0, %v1235
        %v1237 = vpop.f32.mrb[0].mxu0
        %1238 = vdwg.mxu0
        %v1239 = vsel %vm948, %v1209, -inf
        %1240 = vmax.xlane.f32.xlu0 %v1239
        %v1241 = vpop.xlane.xlu0 %1240
        %v1242 = vsel %vm948, %v1212, -inf
        %1243 = vmax.xlane.f32.xlu0 %v1242
        %v1244 = vpop.xlane.xlu0 %1243
        %v1245 = vsel %vm948, %v1217, -inf
        %1246 = vmax.xlane.f32.xlu0 %v1245
        %v1247 = vpop.xlane.xlu0 %1246
        %v1248 = vsel %vm948, %v1220, -inf
        %1249 = vmax.xlane.f32.xlu0 %v1248
        %v1250 = vpop.xlane.xlu0 %1249
        %v1251 = vsel %vm948, %v1225, -inf
        %1252 = vmax.xlane.f32.xlu0 %v1251
        %v1253 = vpop.xlane.xlu0 %1252
        %v1254 = vsel %vm948, %v1228, -inf
        %1255 = vmax.xlane.f32.xlu0 %v1254
        %v1256 = vpop.xlane.xlu0 %1255
        %v1257 = vsel %vm948, %v1233, -inf
        %1258 = vmax.xlane.f32.xlu0 %v1257
        %v1259 = vpop.xlane.xlu0 %1258
        %v1260 = vsel %vm948, %v1236, -inf
        %1261 = vmax.xlane.f32.xlu0 %v1260
        %v1262 = vpop.xlane.xlu0 %1261
        %v1263 = vsub.f32 %v1209, %v1241
        %v1264 = vsub.f32 %v1212, %v1244
        %v1265 = vsub.f32 %v1217, %v1247
        %v1266 = vsub.f32 %v1220, %v1250
        %v1267 = vsub.f32 %v1225, %v1253
        %v1268 = vsub.f32 %v1228, %v1256
        %v1269 = vsub.f32 %v1233, %v1259
        %v1270 = vsub.f32 %v1236, %v1262
        %v1271 = vpack.c.bf16 %v1264, %v1263
        %v1272 = vpack.c.bf16 %v1266, %v1265
        %v1273 = vpack.c.bf16 %v1268, %v1267
        %v1274 = vpack.c.bf16 %v1270, %v1269
        %v1276 = vmul.bf16 %v1271, 1069105081
        %v1277 = vpow.bf16.pop %v1276
        %v1279 = vmul.bf16 %v1272, 1069105081
        %v1280 = vpow.bf16.pop %v1279
        %v1282 = vmul.bf16 %v1273, 1069105081
        %v1283 = vpow.bf16.pop %v1282
        %v1285 = vmul.bf16 %v1274, 1069105081
        %v1286 = vpow.bf16.pop %v1285
        %v1287 = vunpack.c.l.bf16 %v1277
        %v1288 = vunpack.c.h.bf16 %v1277
        %v1289 = vunpack.c.l.bf16 %v1280
        %v1290 = vunpack.c.h.bf16 %v1280
        %v1291 = vunpack.c.l.bf16 %v1283
        %v1292 = vunpack.c.h.bf16 %v1283
        %v1293 = vunpack.c.l.bf16 %v1286
        %v1294 = vunpack.c.h.bf16 %v1286
        %v1295 = vsel %vm948, %v1287, 0.0
        %1296 = vadd.xlane.f32.xlu0 %v1295
        %v1297 = vpop.xlane.xlu0 %1296
        %v1298 = vsel %vm948, %v1288, 0.0
        %1299 = vadd.xlane.f32.xlu0 %v1298
        %v1300 = vpop.xlane.xlu0 %1299
        %v1301 = vsel %vm948, %v1289, 0.0
        %1302 = vadd.xlane.f32.xlu0 %v1301
        %v1303 = vpop.xlane.xlu0 %1302
        %v1304 = vsel %vm948, %v1290, 0.0
        %1305 = vadd.xlane.f32.xlu0 %v1304
        %v1306 = vpop.xlane.xlu0 %1305
        %v1307 = vsel %vm948, %v1291, 0.0
        %1308 = vadd.xlane.f32.xlu0 %v1307
        %v1309 = vpop.xlane.xlu0 %1308
        %v1310 = vsel %vm948, %v1292, 0.0
        %1311 = vadd.xlane.f32.xlu0 %v1310
        %v1312 = vpop.xlane.xlu0 %1311
        %v1313 = vsel %vm948, %v1293, 0.0
        %1314 = vadd.xlane.f32.xlu0 %v1313
        %v1315 = vpop.xlane.xlu0 %1314
        %v1316 = vsel %vm948, %v1294, 0.0
        %1317 = vadd.xlane.f32.xlu0 %v1316
        %v1318 = vpop.xlane.xlu0 %1317
        %v1319 = vrcp.pop %v1297
        %v1320 = vrcp.pop %v1300
        %v1321 = vrcp.pop %v1303
        %v1322 = vrcp.pop %v1306
        %v1323 = vrcp.pop %v1309
        %v1324 = vrcp.pop %v1312
        %v1325 = vrcp.pop %v1315
        %v1326 = vrcp.pop %v1318
        %v1328 = vsel %vm948, %v1277, 0
        %v1331 = vsel %vm948, %v1280, 0
        %v1334 = vsel %vm948, %v1283, 0
        %v1337 = vsel %vm948, %v1286, 0
        %1339 = vmatprep.subr.bf16.mxu0 0
        %1340 = vmatpush1.bf16.msra.mxu0 %v1170
        %1341 = vmatprep.subr.bf16.mxu0 0
        %1342 = vmatpush1.bf16.msra.mxu0 %v1171
        %1343 = vmatprep.subr.bf16.mxu0 0
        %1344 = vmatpush1.bf16.msra.mxu0 %v1172
        %1345 = vmatprep.subr.bf16.mxu0 0
        %1346 = vmatpush1.bf16.msra.mxu0 %v1173
        %1347 = vmatprep.subr.bf16.mxu0 0
        %1348 = vmatpush1.bf16.msra.mxu0 0
        %1349 = vmatprep.subr.bf16.mxu0 0
        %1350 = vmatpush1.bf16.msra.mxu0 0
        %1351 = vmatprep.subr.bf16.mxu0 0
        %1352 = vmatpush1.bf16.msra.mxu0 0
        %1353 = vmatprep.subr.bf16.mxu0 0
        %1354 = vmatpush1.bf16.msra.mxu0 0
        %1355 = vmatprep.subr.bf16.mxu0 0
        %1356 = vmatpush1.bf16.msra.mxu0 0
        %1357 = vmatprep.subr.bf16.mxu0 0
        %1358 = vmatpush1.bf16.msra.mxu0 0
        %1359 = vmatprep.subr.bf16.mxu0 0
        %1360 = vmatpush1.bf16.msra.mxu0 0
        %1361 = vmatprep.subr.bf16.mxu0 0
        %1362 = vmatpush1.bf16.msra.mxu0 0
        %1363 = vmatprep.subr.bf16.mxu0 0
        %1364 = vmatpush1.bf16.msra.mxu0 0
        %1365 = vmatprep.subr.bf16.mxu0 0
        %1366 = vmatpush1.bf16.msra.mxu0 0
        %1367 = vmatprep.subr.bf16.mxu0 0
        %1368 = vmatpush1.bf16.msra.mxu0 0
        %1369 = vmatprep.subr.bf16.mxu0 0
        %1370 = vmatpush1.bf16.msra.mxu0 0
        %1371 = vmatprep.mubr.bf16.mxu0 0
        %1372 = vmatmul.mubr.bf16.gmra.mrb[0].mxu0 %v1328
        %v1373 = vpop.f32.mrb[0].mxu0
        %v1374 = vadd.f32 0.0, %v1373
        %v1375 = vpop.f32.mrb[0].mxu0
        %v1376 = vpop.f32.mrb[0].mxu0
        %v1377 = vadd.f32 0.0, %v1376
        %v1378 = vpop.f32.mrb[0].mxu0
        %1379 = vmatprep.mubr.bf16.mxu0 0
        %1380 = vmatmul.mubr.bf16.gmra.mrb[0].mxu0 %v1331
        %v1381 = vpop.f32.mrb[0].mxu0
        %v1382 = vadd.f32 0.0, %v1381
        %v1383 = vpop.f32.mrb[0].mxu0
        %v1384 = vpop.f32.mrb[0].mxu0
        %v1385 = vadd.f32 0.0, %v1384
        %v1386 = vpop.f32.mrb[0].mxu0
        %1387 = vmatprep.mubr.bf16.mxu0 0
        %1388 = vmatmul.mubr.bf16.gmra.mrb[0].mxu0 %v1334
        %v1389 = vpop.f32.mrb[0].mxu0
        %v1390 = vadd.f32 0.0, %v1389
        %v1391 = vpop.f32.mrb[0].mxu0
        %v1392 = vpop.f32.mrb[0].mxu0
        %v1393 = vadd.f32 0.0, %v1392
        %v1394 = vpop.f32.mrb[0].mxu0
        %1395 = vmatprep.mubr.bf16.mxu0 0
        %1396 = vmatmul.mubr.bf16.gmra.mrb[0].mxu0 %v1337
        %v1397 = vpop.f32.mrb[0].mxu0
        %v1398 = vadd.f32 0.0, %v1397
        %v1399 = vpop.f32.mrb[0].mxu0
        %v1400 = vpop.f32.mrb[0].mxu0
        %v1401 = vadd.f32 0.0, %v1400
        %v1402 = vpop.f32.mrb[0].mxu0
        %1403 = vdwg.mxu0
        %v1404 = vmul.f32 %v1374, %v1319
        %v1405 = vmul.f32 %v1377, %v1320
        %v1406 = vmul.f32 %v1382, %v1321
        %v1407 = vmul.f32 %v1385, %v1322
        %v1408 = vmul.f32 %v1390, %v1323
        %v1409 = vmul.f32 %v1393, %v1324
        %v1410 = vmul.f32 %v1398, %v1325
        %v1411 = vmul.f32 %v1401, %v1326
        %v1412 = vpack.c.bf16 %v1405, %v1404
        %v1413 = vpack.c.bf16 %v1407, %v1406
        %v1414 = vpack.c.bf16 %v1409, %v1408
        %v1415 = vpack.c.bf16 %v1411, %v1410
        %v1420 = vunpack.c.l.b16 %v1412
        %v1421 = vunpack.c.h.b16 %v1412
        %v1422 = vunpack.c.l.b16 %v1413
        %v1423 = vunpack.c.h.b16 %v1413
        %v1424 = vunpack.c.l.b16 %v1414
        %v1425 = vunpack.c.h.b16 %v1414
        %v1426 = vunpack.c.l.b16 %v1415
        %v1427 = vunpack.c.h.b16 %v1415
        %v1428 = vpack.c.b16 %v1420, %v1420
        %v1429 = vpack.c.b16 %v1421, %v1421
        %v1430 = vpack.c.b16 %v1422, %v1422
        %v1431 = vpack.c.b16 %v1423, %v1423
        %v1432 = vpack.c.b16 %v1424, %v1424
        %v1433 = vpack.c.b16 %v1425, %v1425
        %v1434 = vpack.c.b16 %v1426, %v1426
        %v1435 = vpack.c.b16 %v1427, %v1427
        %1444 = vst [vmem:[%s231 + $0x4] sm:$0xf] %v1428
        %1445 = vst [vmem:[%s231 + $0xc] sm:$0xf] %v1429
        %1446 = vst [vmem:[%s231 + $0x14] sm:$0xf] %v1430
        %1447 = vst [vmem:[%s231 + $0x1c] sm:$0xf] %v1431
        %1448 = vst [vmem:[%s231 + $0x24] sm:$0xf] %v1432
        %1449 = vst [vmem:[%s231 + $0x2c] sm:$0xf] %v1433
        %1450 = vst [vmem:[%s231 + $0x34] sm:$0xf] %v1434
        %1451 = vst [vmem:[%s231 + $0x3c] sm:$0xf] %v1435
        %s1452 = sand.u32 %s111, 1
        %s1453 = scalar_lea.sflag [#allocation5], %s1452
        %s1454 = sand.u32 %s111, 1
        %s1455 = smul.addr %s1454, 64
        %s1456 = scalar_lea.vmem [#allocation9], %s1455
        // Predicated region
        $region49: #{tpu_custom_call.1} parent=31 // pred_check
          %p1457 = pneg %p121
        $region50: #{tpu_custom_call.1} parent=31 // pred_check_branch
          %1459 = sbr.rel (%p1457) target = $region52
        $region51: #{tpu_custom_call.1} parent=31 // pred_region
          %s1460 = smul.u32 8, %s26
          %s1462 = ssub.s32 1024, 1024
          %1463 = vsyncadd %s1453, %s1462
          %s1464 = smul.addr %s1460, 2
          %s1465 = smul.addr %s25, 16
          %s1466 = sadd.s32 %s1464, %s1465
          %s1467 = smul.addr %s1466, 64
          %s1468 = scalar_lea.hbm %s3, %s1467
          %s1469 = sshll.u32 %s1456, 4
          %s1470 = int_to_ptr.vmem [resolvable:$true] %s1469
          %1475 = dma.vmem_to_hbm [thread:$0]  %s1470, 1024, %s1468, %s1453, 128, 128, 8
        $region52: #{tpu_custom_call.1} parent=31 // pred_fallthru
          _
      $region32: #{tpu_custom_call.1} parent=5 // pred_fallthru
        _
      %p1476 = scmp.le.s32.totalorder 2, %s16
      // Predicated region
      $region53: #{tpu_custom_call.1} parent=5 // pred_check
        %p1477 = pneg %p1476
      $region54: #{tpu_custom_call.1} parent=5 // pred_check_branch
        %1479 = sbr.rel (%p1477) target = $region56
      $region55: #{tpu_custom_call.1} parent=5 // pred_region
        %s1480 = ssub.s32 %s16, 2
        // Predicated region
        $region57: #{tpu_custom_call.1} parent=55 // pred_check
          %p1481 = pneg %p127
        $region58: #{tpu_custom_call.1} parent=55 // pred_check_branch
          %1483 = sbr.rel (%p1481) target = $region60
        $region59: #{tpu_custom_call.1} parent=55 // pred_region
          %s1484 = sand.u32 %s112, 1
          %s1485 = scalar_lea.sflag [#allocation5], %s1484
          %s1486 = sand.u32 %s112, 1
          %s1487 = smul.addr %s1486, 64
          %s1488 = scalar_lea.vmem [#allocation9], %s1487
          %1489 = dma.done %s1485, 1024
        $region60: #{tpu_custom_call.1} parent=55 // pred_fallthru
          _
      $region56: #{tpu_custom_call.1} parent=5 // pred_fallthru
        _
    $region6: #{tpu_custom_call.1} parent=1 // loop_footer
      %s20 = sadd.s32 1, %s16
    $region7: #{tpu_custom_call.1} parent=1 // loop_footer_branch
      %15 = sbr.rel target = $region3
    $region8: #{tpu_custom_call.1} parent=1 // loop_exit
      _
    %1490 = vsyncpa [#allocation4], 1
    %s1491 = scalar_lea.sflag [#allocation4], 1
    %1492 = vsyncpa %s1491, 1
    %1493 = vsyncpa [#allocation7], 1
    %1494 = vsyncpa [#allocation5], 1
    %s1495 = scalar_lea.sflag [#allocation5], 1
    %1496 = vsyncpa %s1495, 1

</llo_original>
